<compile_context>
chip_gen: v6e
topology: v6e:2x2x1
jax: 0.10.0
libtpu: 0.0.40
codegen_flags: <defaults>
</compile_context>

<pallas_src>
import functools

import jax
import jax.numpy as jnp
from jax.experimental import pallas as pl
from jax.experimental.pallas import tpu as pltpu


# ----------------------------------------------------------------------------
# Fused per-(batch, query-tile) MHA kernel body.
# ----------------------------------------------------------------------------
def _mha_body(q_in_ref, k_in_ref, v_in_ref,
              wq_ref, bq_ref, wk_ref, bk_ref, wv_ref, bv_ref, wo_ref, bo_ref,
              mask_ref, dist_ref, out_ref, kproj_ref, vproj_ref,
              *, n_heads, head_dim, inv_scale, mask_heads):
    qi = pl.program_id(1)

    # Project K and V once per batch (first query tile); projected bf16
    # activations stay resident in VMEM scratch for all query tiles.
    @pl.when(qi == 0)
    def _():
        Kx = k_in_ref[0].astype(jnp.bfloat16)              # (Sk, D)
        Vx = v_in_ref[0].astype(jnp.bfloat16)              # (Sk, D)
        k = jnp.dot(Kx, wk_ref[...], preferred_element_type=jnp.float32)
        k = k + bk_ref[...]
        v = jnp.dot(Vx, wv_ref[...], preferred_element_type=jnp.float32)
        v = v + bv_ref[...]
        kproj_ref[...] = k.astype(jnp.bfloat16)
        vproj_ref[...] = v.astype(jnp.bfloat16)

    # Q projection for this query tile; fold 1/sqrt(head_dim) into Q (one small
    # f32 multiply instead of scaling the (tq, Sk) score tile per head).
    Qx = q_in_ref[0].astype(jnp.bfloat16)                  # (tq, D)
    q = jnp.dot(Qx, wq_ref[...], preferred_element_type=jnp.float32)
    q = (q + bq_ref[...]) * jnp.float32(inv_scale)
    q = q.astype(jnp.bfloat16)

    k = kproj_ref[...]                                     # (Sk, D) bf16
    v = vproj_ref[...]                                     # (Sk, D) bf16

    m_all = None
    if mask_ref is not None:
        m_all = mask_ref[0]                                # (Hm, Sq_m, Sk_m) int8

    # Unrolled per-head loop with lane-contiguous slices (no head reshapes).
    ctx_parts = []
    for h in range(n_heads):
        lo, hi = h * head_dim, (h + 1) * head_dim
        qh = q[:, lo:hi]                                   # (tq, Hd) bf16
        kh = k[:, lo:hi]                                   # (Sk, Hd) bf16
        vh = v[:, lo:hi]                                   # (Sk, Hd) bf16

        # scores = qh @ kh^T, contracting head_dim; f32 accumulation.
        s = jax.lax.dot_general(qh, kh, (((1,), (1,)), ((), ())),
                                preferred_element_type=jnp.float32)  # (tq, Sk)

        if m_all is not None:
            mh = m_all[h] if mask_heads > 1 else m_all[0]
            s = jnp.where(mh != 0, jnp.float32(-1e10), s)  # masked_fill(mask, -1e10)

        # Numerically-stable softmax over keys (all in f32).
        s = s - jnp.max(s, axis=-1, keepdims=True)
        e = jnp.exp(s)
        denom = jnp.sum(e, axis=-1, keepdims=True)
        dist = e * pl.reciprocal(denom, approx=False)
        if dist_ref is not None:
            dist_ref[0, h] = dist.astype(dist_ref.dtype)

        # context_h = dist @ vh, bf16 operands, f32 accumulation.
        ctx_parts.append(jnp.dot(dist.astype(jnp.bfloat16), vh,
                                 preferred_element_type=jnp.float32))

    ctx = jnp.concatenate(ctx_parts, axis=-1).astype(jnp.bfloat16)   # (tq, D)
    out = jnp.dot(ctx, wo_ref[...], preferred_element_type=jnp.float32)
    out = out + bo_ref[...]
    out_ref[0] = out.astype(out_ref.dtype)


def _make_kernel(*, n_heads, head_dim, inv_scale, has_mask, mask_heads,
                 return_dist):
    def kernel(*refs):
        (q_in_ref, k_in_ref, v_in_ref,
         wq_ref, bq_ref, wk_ref, bk_ref, wv_ref, bv_ref,
         wo_ref, bo_ref) = refs[:11]
        idx = 11
        mask_ref = None
        if has_mask:
            mask_ref = refs[idx]
            idx += 1
        dist_ref = None
        if return_dist:
            dist_ref = refs[idx]
            idx += 1
        out_ref = refs[idx]
        kproj_ref, vproj_ref = refs[idx + 1], refs[idx + 2]
        _mha_body(q_in_ref, k_in_ref, v_in_ref,
                  wq_ref, bq_ref, wk_ref, bk_ref, wv_ref, bv_ref,
                  wo_ref, bo_ref, mask_ref, dist_ref, out_ref,
                  kproj_ref, vproj_ref,
                  n_heads=n_heads, head_dim=head_dim, inv_scale=inv_scale,
                  mask_heads=mask_heads)
    return kernel


# ----------------------------------------------------------------------------
# Full MHA forward: single fused pallas_call, grid = (batch, query tiles).
# ----------------------------------------------------------------------------
def mha_forward(Q, K, V, params, n_heads, mask=None, *, return_dist=True,
                block_q=128):
    B, Sq, D = Q.shape
    Sk = K.shape[1]
    assert D % n_heads == 0
    head_dim = D // n_heads
    inv_scale = 1.0 / (float(head_dim) ** 0.5)

    # Query-tile size (128 is a good default on v7x; 256 on v5e/v6e).
    tq = min(block_q, Sq)
    if Sq % tq != 0:
        tq = Sq  # TODO(synk): ragged last query tile instead of full fallback.
    n_q_blocks = Sq // tq

    # Weights bf16 in HBM (half the DMA / residency); biases stay f32.
    wq = params["wq"].astype(jnp.bfloat16)
    wk = params["wk"].astype(jnp.bfloat16)
    wv = params["wv"].astype(jnp.bfloat16)
    wo = params["wo"].astype(jnp.bfloat16)
    bq = params["bq"].reshape(1, D).astype(jnp.float32)
    bk = params["bk"].reshape(1, D).astype(jnp.float32)
    bv = params["bv"].reshape(1, D).astype(jnp.float32)
    bo = params["bo"].reshape(1, D).astype(jnp.float32)

    # Constant block index -> weights/biases stay VMEM-resident for the grid.
    weight_spec = pl.BlockSpec((D, D), lambda b, qi: (0, 0))
    bias_spec = pl.BlockSpec((1, D), lambda b, qi: (0, 0))

    in_arrays = [Q, K, V, wq, bq, wk, bk, wv, bv, wo, bo]
    in_specs = [
        pl.BlockSpec((1, tq, D), lambda b, qi: (b, qi, 0)),   # Q tile
        pl.BlockSpec((1, Sk, D), lambda b, qi: (b, 0, 0)),    # K (per batch)
        pl.BlockSpec((1, Sk, D), lambda b, qi: (b, 0, 0)),    # V (per batch)
        weight_spec, bias_spec,
        weight_spec, bias_spec,
        weight_spec, bias_spec,
        weight_spec, bias_spec,
    ]

    has_mask = mask is not None
    mask_heads = 1
    mask_bytes = 0
    if has_mask:
        m = jnp.asarray(mask)
        while m.ndim < 4:
            m = m[None]
        m = m.astype(jnp.int8)          # minimal broadcastable shape; never tiled to B
        Bm, Hm, Sqm, Skm = m.shape
        mask_heads = Hm
        mq_blk = tq if Sqm == Sq else Sqm
        mask_spec = pl.BlockSpec(
            (1, Hm, mq_blk, Skm),
            lambda b, qi: ((b if Bm > 1 else 0), 0, (qi if Sqm == Sq else 0), 0))
        in_arrays.append(m)
        in_specs.append(mask_spec)
        mask_bytes = int(m.size)

    out_shape = []
    out_specs = []
    if return_dist:
        out_shape.append(jax.ShapeDtypeStruct((B, n_heads, Sq, Sk), jnp.float32))
        out_specs.append(pl.BlockSpec((1, n_heads, tq, Sk),
                                      lambda b, qi: (b, 0, qi, 0)))
    out_shape.append(jax.ShapeDtypeStruct((B, Sq, D), Q.dtype))
    out_specs.append(pl.BlockSpec((1, tq, D), lambda b, qi: (b, qi, 0)))

    scratch_shapes = [
        pltpu.VMEM((Sk, D), jnp.bfloat16),   # projected K (per batch)
        pltpu.VMEM((Sk, D), jnp.bfloat16),   # projected V (per batch)
    ]

    # --- compiler hints: VMEM budget + cost estimate -------------------------
    vmem_est = (
        2 * (tq * D) * 4                 # Q input tile (double-buffered, f32)
        + 2 * 2 * (Sk * D) * 4           # K, V input blocks (double-buffered)
        + 2 * 4 * (D * D) * 2            # 4 bf16 weights (double-buffered)
        + 2 * 4 * D * 4                  # 4 f32 biases
        + 2 * (Sk * D) * 2               # kproj / vproj scratch
        + 2 * (tq * D) * 4               # x output tile (double-buffered)
        + (2 * n_heads * tq * Sk * 4 if return_dist else 0)   # dist tile
        + 4 * tq * Sk * 4                # live score / exp temporaries
        + 2 * mask_bytes
    )
    vmem_limit = int(min(max(vmem_est * 1.5, 32 * 1024 * 1024),
                         64 * 1024 * 1024))

    proj_flops = 2 * B * D * D * (2 * Sq + 2 * Sk)           # fc_q/fc_o, fc_k/fc_v
    attn_flops = 2 * B * 2 * Sq * Sk * D                     # QK^T + PV
    bytes_accessed = (
        4 * B * Sq * D                    # Q (f32)
        + 2 * 4 * B * Sk * D              # K, V (f32)
        + 2 * 4 * D * D                   # bf16 weights
        + 4 * 4 * D                       # f32 biases
        + 4 * B * Sq * D                  # x output
        + (4 * B * n_heads * Sq * Sk if return_dist else 0)
        + mask_bytes
    )
    cost = pl.CostEstimate(flops=proj_flops + attn_flops,
                           transcendentals=B * n_heads * Sq * Sk,
                           bytes_accessed=bytes_accessed)

    kern = _make_kernel(n_heads=n_heads, head_dim=head_dim, inv_scale=inv_scale,
                        has_mask=has_mask, mask_heads=mask_heads,
                        return_dist=return_dist)

    results = pl.pallas_call(
        kern,
        out_shape=tuple(out_shape),
        grid=(B, n_q_blocks),
        in_specs=in_specs,
        out_specs=tuple(out_specs),
        scratch_shapes=scratch_shapes,
        compiler_params=pltpu.CompilerParams(
            dimension_semantics=("parallel", "arbitrary"),
            vmem_limit_bytes=vmem_limit,
        ),
        cost_estimate=cost,
    )(*in_arrays)

    if return_dist:
        dist, x = results
        return x, dist
    (x,) = results
    return x, None


# ----------------------------------------------------------------------------
# Pure-JAX reference for correctness checking (mirrors the torch module).
# ----------------------------------------------------------------------------
def mha_reference(Q, K, V, params, n_heads, mask=None):
    B, Sq, D = Q.shape
    Sk = K.shape[1]
    head_dim = D // n_heads
    scale = jnp.sqrt(jnp.float32(head_dim))
    q = Q @ params["wq"] + params["bq"]
    k = K @ params["wk"] + params["bk"]
    v = V @ params["wv"] + params["bv"]
    qh = q.reshape(B, Sq, n_heads, head_dim).transpose(0, 2, 1, 3)
    kh = k.reshape(B, Sk, n_heads, head_dim).transpose(0, 2, 1, 3)
    vh = v.reshape(B, Sk, n_heads, head_dim).transpose(0, 2, 1, 3)
    s = (qh @ kh.transpose(0, 1, 3, 2)) / scale
    if mask is not None:
        s = jnp.where(mask, jnp.float32(-1e10), s)
    dist = jax.nn.softmax(s, axis=-1)
    attn = dist @ vh
    x = attn.transpose(0, 2, 1, 3).reshape(B, Sq, D)
    x = x @ params["wo"] + params["bo"]
    return x, dist


if __name__ == "__main__":
    d_model, n_heads = 32, 4
    batch, seq = 2, 16

    key = jax.random.PRNGKey(0)
    keys = jax.random.split(key, 11)
    params = {
        "wq": jax.random.normal(keys[0], (d_model, d_model), jnp.float32) * 0.05,
        "bq": jax.random.normal(keys[1], (d_model,), jnp.float32) * 0.05,
        "wk": jax.random.normal(keys[2], (d_model, d_model), jnp.float32) * 0.05,
        "bk": jax.random.normal(keys[3], (d_model,), jnp.float32) * 0.05,
        "wv": jax.random.normal(keys[4], (d_model, d_model), jnp.float32) * 0.05,
        "bv": jax.random.normal(keys[5], (d_model,), jnp.float32) * 0.05,
        "wo": jax.random.normal(keys[6], (d_model, d_model), jnp.float32) * 0.05,
        "bo": jax.random.normal(keys[7], (d_model,), jnp.float32) * 0.05,
    }

    Q = jax.random.normal(keys[8], (batch, seq, d_model), jnp.float32)
    K = jax.random.normal(keys[9], (batch, seq, d_model), jnp.float32)
    V = jax.random.normal(keys[10], (batch, seq, d_model), jnp.float32)

    # bf16 MXU operands (f32 accumulation) -> relaxed tolerances vs f32 ref.
    X_TOL = dict(atol=1e-2, rtol=1e-2)
    D_TOL = dict(atol=2e-3, rtol=1e-2)

    # --- unmasked path (block_q=8 -> 2 query tiles, exercises K/V scratch) ---
    x, dist = mha_forward(Q, K, V, params, n_heads, mask=None, block_q=8)
    x = jax.block_until_ready(x)
    dist = jax.block_until_ready(dist)
    x_exp, dist_exp = mha_reference(Q, K, V, params, n_heads, mask=None)
    assert x.shape == (batch, seq, d_model)
    assert dist.shape == (batch, n_heads, seq, seq)
    assert jnp.allclose(x, x_exp, **X_TOL)
    assert jnp.allclose(dist, dist_exp, **D_TOL)

    # --- masked path (causal mask kept at its minimal (1,1,S,S) shape) ---
    causal = jnp.triu(jnp.ones((seq, seq), dtype=jnp.bool_), k=1)[None, None]
    xm, distm = mha_forward(Q, K, V, params, n_heads, mask=causal, block_q=8)
    xm = jax.block_until_ready(xm)
    distm = jax.block_until_ready(distm)
    xm_exp, distm_exp = mha_reference(Q, K, V, params, n_heads, mask=causal)
    assert jnp.allclose(xm, xm_exp, **X_TOL)
    assert jnp.allclose(distm, distm_exp, **D_TOL)

    # --- x-only path: drop the (B,H,Sq,Sk) dist store entirely ---
    x2, none_dist = mha_forward(Q, K, V, params, n_heads, mask=causal,
                                return_dist=False, block_q=8)
    x2 = jax.block_until_ready(x2)
    assert none_dist is None
    assert jnp.allclose(x2, xm_exp, **X_TOL)

    print("KERNEL_OK")
</pallas_src>

<mosaic_0001>
module attributes {stable_mosaic.version = 11 : i64} {
  func.func @kernel(%arg0: i32, %arg1: i32, %arg2: memref<1x8x32xf32, #tpu.memory_space<vmem>>, %arg3: memref<1x16x32xf32, #tpu.memory_space<vmem>>, %arg4: memref<1x16x32xf32, #tpu.memory_space<vmem>>, %arg5: memref<32x32xbf16, #tpu.memory_space<vmem>>, %arg6: memref<1x32xf32, #tpu.memory_space<vmem>>, %arg7: memref<32x32xbf16, #tpu.memory_space<vmem>>, %arg8: memref<1x32xf32, #tpu.memory_space<vmem>>, %arg9: memref<32x32xbf16, #tpu.memory_space<vmem>>, %arg10: memref<1x32xf32, #tpu.memory_space<vmem>>, %arg11: memref<32x32xbf16, #tpu.memory_space<vmem>>, %arg12: memref<1x32xf32, #tpu.memory_space<vmem>>, %arg13: memref<1x4x8x16xf32, #tpu.memory_space<vmem>>, %arg14: memref<1x8x32xf32, #tpu.memory_space<vmem>>, %arg15: memref<16x32xbf16, #tpu.memory_space<vmem>>, %arg16: memref<16x32xbf16, #tpu.memory_space<vmem>>) attributes {dimension_semantics = [#tpu.dimension_semantics<parallel>, #tpu.dimension_semantics<arbitrary>], iteration_bounds = array<i64: 2, 2>, scalar_prefetch = 0 : i64, scratch_operands = 2 : i64, tpu.core_type = #tpu.core_type<tc>, window_params = [{transform_indices = @transform_0, window_bounds = array<i64: 1, 8, 32>}, {transform_indices = @transform_1, window_bounds = array<i64: 1, 16, 32>}, {transform_indices = @transform_2, window_bounds = array<i64: 1, 16, 32>}, {pipeline_mode = #tpu.pipeline_mode<synchronous>, transform_indices = @transform_3, window_bounds = array<i64: 32, 32>}, {pipeline_mode = #tpu.pipeline_mode<synchronous>, transform_indices = @transform_4, window_bounds = array<i64: 1, 32>}, {pipeline_mode = #tpu.pipeline_mode<synchronous>, transform_indices = @transform_5, window_bounds = array<i64: 32, 32>}, {pipeline_mode = #tpu.pipeline_mode<synchronous>, transform_indices = @transform_6, window_bounds = array<i64: 1, 32>}, {pipeline_mode = #tpu.pipeline_mode<synchronous>, transform_indices = @transform_7, window_bounds = array<i64: 32, 32>}, {pipeline_mode = #tpu.pipeline_mode<synchronous>, transform_indices = @transform_8, window_bounds = array<i64: 1, 32>}, {pipeline_mode = #tpu.pipeline_mode<synchronous>, transform_indices = @transform_9, window_bounds = array<i64: 32, 32>}, {pipeline_mode = #tpu.pipeline_mode<synchronous>, transform_indices = @transform_10, window_bounds = array<i64: 1, 32>}, {transform_indices = @transform_11, window_bounds = array<i64: 1, 4, 8, 16>}, {transform_indices = @transform_12, window_bounds = array<i64: 1, 8, 32>}]} {
    %c0_i32 = arith.constant 0 : i32
    %0 = arith.cmpi eq, %arg1, %c0_i32 : i32
    %1 = arith.extui %0 : i1 to i32
    %c0_i32_0 = arith.constant 0 : i32
    %2 = arith.cmpi ne, %1, %c0_i32_0 : i32
    scf.if %2 {
      %c0_49 = arith.constant 0 : index
      %c0_50 = arith.constant 0 : index
      %c0_51 = arith.constant 0 : index
      %102 = vector.load %arg3[%c0_49, %c0_50, %c0_51] : memref<1x16x32xf32, #tpu.memory_space<vmem>>, vector<1x16x32xf32>
      %103 = vector.shape_cast %102 : vector<1x16x32xf32> to vector<16x32xf32>
      %104 = arith.truncf %103 : vector<16x32xf32> to vector<16x32xbf16>
      %c0_52 = arith.constant 0 : index
      %c0_53 = arith.constant 0 : index
      %c0_54 = arith.constant 0 : index
      %105 = vector.load %arg4[%c0_52, %c0_53, %c0_54] : memref<1x16x32xf32, #tpu.memory_space<vmem>>, vector<1x16x32xf32>
      %106 = vector.shape_cast %105 : vector<1x16x32xf32> to vector<16x32xf32>
      %107 = arith.truncf %106 : vector<16x32xf32> to vector<16x32xbf16>
      %c0_55 = arith.constant 0 : index
      %c0_56 = arith.constant 0 : index
      %108 = vector.load %arg7[%c0_55, %c0_56] : memref<32x32xbf16, #tpu.memory_space<vmem>>, vector<32x32xbf16>
      %cst_57 = arith.constant dense<0.000000e+00> : vector<16x32xf32>
      %109 = tpu.matmul %104, %108, %cst_57 {dimension_numbers = #tpu.dot_dimension_numbers<[1], [0], [0], [1], [0, 0, 1, 1], [], []>} : vector<16x32xbf16>, vector<32x32xbf16>, vector<16x32xf32> -> vector<16x32xf32>
      %c0_58 = arith.constant 0 : index
      %c0_59 = arith.constant 0 : index
      %110 = vector.load %arg8[%c0_58, %c0_59] : memref<1x32xf32, #tpu.memory_space<vmem>>, vector<1x32xf32>
      %111 = vector.broadcast %110 : vector<1x32xf32> to vector<16x32xf32>
      %112 = arith.addf %109, %111 : vector<16x32xf32>
      %c0_60 = arith.constant 0 : index
      %c0_61 = arith.constant 0 : index
      %113 = vector.load %arg9[%c0_60, %c0_61] : memref<32x32xbf16, #tpu.memory_space<vmem>>, vector<32x32xbf16>
      %cst_62 = arith.constant dense<0.000000e+00> : vector<16x32xf32>
      %114 = tpu.matmul %107, %113, %cst_62 {dimension_numbers = #tpu.dot_dimension_numbers<[1], [0], [0], [1], [0, 0, 1, 1], [], []>} : vector<16x32xbf16>, vector<32x32xbf16>, vector<16x32xf32> -> vector<16x32xf32>
      %c0_63 = arith.constant 0 : index
      %c0_64 = arith.constant 0 : index
      %115 = vector.load %arg10[%c0_63, %c0_64] : memref<1x32xf32, #tpu.memory_space<vmem>>, vector<1x32xf32>
      %116 = vector.broadcast %115 : vector<1x32xf32> to vector<16x32xf32>
      %117 = arith.addf %114, %116 : vector<16x32xf32>
      %118 = arith.truncf %112 : vector<16x32xf32> to vector<16x32xbf16>
      %c0_65 = arith.constant 0 : index
      %c0_66 = arith.constant 0 : index
      %119 = vector.load %arg15[%c0_65, %c0_66] : memref<16x32xbf16, #tpu.memory_space<vmem>>, vector<16x32xbf16>
      tpu.vector_store %arg15[%c0_65, %c0_66], %118 {strides = array<i32>} : memref<16x32xbf16, #tpu.memory_space<vmem>>, vector<16x32xbf16>,
      %120 = arith.truncf %117 : vector<16x32xf32> to vector<16x32xbf16>
      %c0_67 = arith.constant 0 : index
      %c0_68 = arith.constant 0 : index
      %121 = vector.load %arg16[%c0_67, %c0_68] : memref<16x32xbf16, #tpu.memory_space<vmem>>, vector<16x32xbf16>
      tpu.vector_store %arg16[%c0_67, %c0_68], %120 {strides = array<i32>} : memref<16x32xbf16, #tpu.memory_space<vmem>>, vector<16x32xbf16>,
    } else {
    }
    %c0 = arith.constant 0 : index
    %c0_1 = arith.constant 0 : index
    %c0_2 = arith.constant 0 : index
    %3 = vector.load %arg2[%c0, %c0_1, %c0_2] : memref<1x8x32xf32, #tpu.memory_space<vmem>>, vector<1x8x32xf32>
    %4 = vector.shape_cast %3 : vector<1x8x32xf32> to vector<8x32xf32>
    %5 = arith.truncf %4 : vector<8x32xf32> to vector<8x32xbf16>
    %c0_3 = arith.constant 0 : index
    %c0_4 = arith.constant 0 : index
    %6 = vector.load %arg5[%c0_3, %c0_4] : memref<32x32xbf16, #tpu.memory_space<vmem>>, vector<32x32xbf16>
    %cst = arith.constant dense<0.000000e+00> : vector<8x32xf32>
    %7 = tpu.matmul %5, %6, %cst {dimension_numbers = #tpu.dot_dimension_numbers<[1], [0], [0], [1], [0, 0, 1, 1], [], []>} : vector<8x32xbf16>, vector<32x32xbf16>, vector<8x32xf32> -> vector<8x32xf32>
    %c0_5 = arith.constant 0 : index
    %c0_6 = arith.constant 0 : index
    %8 = vector.load %arg6[%c0_5, %c0_6] : memref<1x32xf32, #tpu.memory_space<vmem>>, vector<1x32xf32>
    %9 = vector.broadcast %8 : vector<1x32xf32> to vector<8x32xf32>
    %10 = arith.addf %7, %9 : vector<8x32xf32>
    %cst_7 = arith.constant 0.353553385 : f32
    %11 = vector.broadcast %cst_7 : f32 to vector<8x32xf32>
    %12 = arith.mulf %10, %11 : vector<8x32xf32>
    %13 = arith.truncf %12 : vector<8x32xf32> to vector<8x32xbf16>
    %c0_8 = arith.constant 0 : index
    %c0_9 = arith.constant 0 : index
    %14 = vector.load %arg15[%c0_8, %c0_9] : memref<16x32xbf16, #tpu.memory_space<vmem>>, vector<16x32xbf16>
    %c0_10 = arith.constant 0 : index
    %c0_11 = arith.constant 0 : index
    %15 = vector.load %arg16[%c0_10, %c0_11] : memref<16x32xbf16, #tpu.memory_space<vmem>>, vector<16x32xbf16>
    %16 = vector.extract_strided_slice %13 {offsets = [0, 0], sizes = [8, 8], strides = [1, 1]} : vector<8x32xbf16> to vector<8x8xbf16>
    %17 = vector.extract_strided_slice %14 {offsets = [0, 0], sizes = [16, 8], strides = [1, 1]} : vector<16x32xbf16> to vector<16x8xbf16>
    %18 = vector.extract_strided_slice %15 {offsets = [0, 0], sizes = [16, 8], strides = [1, 1]} : vector<16x32xbf16> to vector<16x8xbf16>
    %cst_12 = arith.constant dense<0.000000e+00> : vector<8x16xf32>
    %19 = tpu.matmul %16, %17, %cst_12 {dimension_numbers = #tpu.dot_dimension_numbers<[1], [1], [0], [0], [0, 0, 1, 0], [], []>} : vector<8x8xbf16>, vector<16x8xbf16>, vector<8x16xf32> -> vector<8x16xf32>
    %cst_13 = arith.constant dense<0xFF800000> : vector<8xf32>
    %20 = vector.multi_reduction <maximumf>, %19, %cst_13 [1] : vector<8x16xf32> to vector<8xf32>
    %21 = vector.shape_cast %20 : vector<8xf32> to vector<8x1xf32>
    %22 = vector.broadcast %21 : vector<8x1xf32> to vector<8x16xf32>
    %23 = arith.subf %19, %22 : vector<8x16xf32>
    %24 = math.exp %23 : vector<8x16xf32>
    %cst_14 = arith.constant dense<0.000000e+00> : vector<8xf32>
    %25 = vector.multi_reduction <add>, %24, %cst_14 [1] : vector<8x16xf32> to vector<8xf32>
    %26 = vector.shape_cast %25 : vector<8xf32> to vector<8x1xf32>
    %27 = tpu.reciprocal %26 : vector<8x1xf32> -> vector<8x1xf32>
    %28 = vector.broadcast %27 : vector<8x1xf32> to vector<8x16xf32>
    %29 = arith.mulf %24, %28 : vector<8x16xf32>
    %c0_15 = arith.constant 0 : index
    %c0_16 = arith.constant 0 : index
    %c0_17 = arith.constant 0 : index
    %c0_18 = arith.constant 0 : index
    %30 = vector.load %arg13[%c0_15, %c0_16, %c0_17, %c0_18] : memref<1x4x8x16xf32, #tpu.memory_space<vmem>>, vector<1x1x8x16xf32>
    %31 = vector.shape_cast %30 : vector<1x1x8x16xf32> to vector<8x16xf32>
    %32 = vector.shape_cast %29 : vector<8x16xf32> to vector<1x1x8x16xf32>
    tpu.vector_store %arg13[%c0_15, %c0_16, %c0_17, %c0_18], %32 {strides = array<i32>} : memref<1x4x8x16xf32, #tpu.memory_space<vmem>>, vector<1x1x8x16xf32>,
    %33 = arith.truncf %29 : vector<8x16xf32> to vector<8x16xbf16>
    %cst_19 = arith.constant dense<0.000000e+00> : vector<8x8xf32>
    %34 = tpu.matmul %33, %18, %cst_19 {dimension_numbers = #tpu.dot_dimension_numbers<[1], [0], [0], [1], [0, 0, 1, 1], [], []>} : vector<8x16xbf16>, vector<16x8xbf16>, vector<8x8xf32> -> vector<8x8xf32>
    %35 = vector.extract_strided_slice %13 {offsets = [0, 8], sizes = [8, 8], strides = [1, 1]} : vector<8x32xbf16> to vector<8x8xbf16>
    %36 = vector.extract_strided_slice %14 {offsets = [0, 8], sizes = [16, 8], strides = [1, 1]} : vector<16x32xbf16> to vector<16x8xbf16>
    %37 = vector.extract_strided_slice %15 {offsets = [0, 8], sizes = [16, 8], strides = [1, 1]} : vector<16x32xbf16> to vector<16x8xbf16>
    %cst_20 = arith.constant dense<0.000000e+00> : vector<8x16xf32>
    %38 = tpu.matmul %35, %36, %cst_20 {dimension_numbers = #tpu.dot_dimension_numbers<[1], [1], [0], [0], [0, 0, 1, 0], [], []>} : vector<8x8xbf16>, vector<16x8xbf16>, vector<8x16xf32> -> vector<8x16xf32>
    %cst_21 = arith.constant dense<0xFF800000> : vector<8xf32>
    %39 = vector.multi_reduction <maximumf>, %38, %cst_21 [1] : vector<8x16xf32> to vector<8xf32>
    %40 = vector.shape_cast %39 : vector<8xf32> to vector<8x1xf32>
    %41 = vector.broadcast %40 : vector<8x1xf32> to vector<8x16xf32>
    %42 = arith.subf %38, %41 : vector<8x16xf32>
    %43 = math.exp %42 : vector<8x16xf32>
    %cst_22 = arith.constant dense<0.000000e+00> : vector<8xf32>
    %44 = vector.multi_reduction <add>, %43, %cst_22 [1] : vector<8x16xf32> to vector<8xf32>
    %45 = vector.shape_cast %44 : vector<8xf32> to vector<8x1xf32>
    %46 = tpu.reciprocal %45 : vector<8x1xf32> -> vector<8x1xf32>
    %47 = vector.broadcast %46 : vector<8x1xf32> to vector<8x16xf32>
    %48 = arith.mulf %43, %47 : vector<8x16xf32>
    %c0_23 = arith.constant 0 : index
    %c1 = arith.constant 1 : index
    %c0_24 = arith.constant 0 : index
    %c0_25 = arith.constant 0 : index
    %49 = vector.load %arg13[%c0_23, %c1, %c0_24, %c0_25] : memref<1x4x8x16xf32, #tpu.memory_space<vmem>>, vector<1x1x8x16xf32>
    %50 = vector.shape_cast %49 : vector<1x1x8x16xf32> to vector<8x16xf32>
    %51 = vector.shape_cast %48 : vector<8x16xf32> to vector<1x1x8x16xf32>
    tpu.vector_store %arg13[%c0_23, %c1, %c0_24, %c0_25], %51 {strides = array<i32>} : memref<1x4x8x16xf32, #tpu.memory_space<vmem>>, vector<1x1x8x16xf32>,
    %52 = arith.truncf %48 : vector<8x16xf32> to vector<8x16xbf16>
    %cst_26 = arith.constant dense<0.000000e+00> : vector<8x8xf32>
    %53 = tpu.matmul %52, %37, %cst_26 {dimension_numbers = #tpu.dot_dimension_numbers<[1], [0], [0], [1], [0, 0, 1, 1], [], []>} : vector<8x16xbf16>, vector<16x8xbf16>, vector<8x8xf32> -> vector<8x8xf32>
    %54 = vector.extract_strided_slice %13 {offsets = [0, 16], sizes = [8, 8], strides = [1, 1]} : vector<8x32xbf16> to vector<8x8xbf16>
    %55 = vector.extract_strided_slice %14 {offsets = [0, 16], sizes = [16, 8], strides = [1, 1]} : vector<16x32xbf16> to vector<16x8xbf16>
    %56 = vector.extract_strided_slice %15 {offsets = [0, 16], sizes = [16, 8], strides = [1, 1]} : vector<16x32xbf16> to vector<16x8xbf16>
    %cst_27 = arith.constant dense<0.000000e+00> : vector<8x16xf32>
    %57 = tpu.matmul %54, %55, %cst_27 {dimension_numbers = #tpu.dot_dimension_numbers<[1], [1], [0], [0], [0, 0, 1, 0], [], []>} : vector<8x8xbf16>, vector<16x8xbf16>, vector<8x16xf32> -> vector<8x16xf32>
    %cst_28 = arith.constant dense<0xFF800000> : vector<8xf32>
    %58 = vector.multi_reduction <maximumf>, %57, %cst_28 [1] : vector<8x16xf32> to vector<8xf32>
    %59 = vector.shape_cast %58 : vector<8xf32> to vector<8x1xf32>
    %60 = vector.broadcast %59 : vector<8x1xf32> to vector<8x16xf32>
    %61 = arith.subf %57, %60 : vector<8x16xf32>
    %62 = math.exp %61 : vector<8x16xf32>
    %cst_29 = arith.constant dense<0.000000e+00> : vector<8xf32>
    %63 = vector.multi_reduction <add>, %62, %cst_29 [1] : vector<8x16xf32> to vector<8xf32>
    %64 = vector.shape_cast %63 : vector<8xf32> to vector<8x1xf32>
    %65 = tpu.reciprocal %64 : vector<8x1xf32> -> vector<8x1xf32>
    %66 = vector.broadcast %65 : vector<8x1xf32> to vector<8x16xf32>
    %67 = arith.mulf %62, %66 : vector<8x16xf32>
    %c0_30 = arith.constant 0 : index
    %c2 = arith.constant 2 : index
    %c0_31 = arith.constant 0 : index
    %c0_32 = arith.constant 0 : index
    %68 = vector.load %arg13[%c0_30, %c2, %c0_31, %c0_32] : memref<1x4x8x16xf32, #tpu.memory_space<vmem>>, vector<1x1x8x16xf32>
    %69 = vector.shape_cast %68 : vector<1x1x8x16xf32> to vector<8x16xf32>
    %70 = vector.shape_cast %67 : vector<8x16xf32> to vector<1x1x8x16xf32>
    tpu.vector_store %arg13[%c0_30, %c2, %c0_31, %c0_32], %70 {strides = array<i32>} : memref<1x4x8x16xf32, #tpu.memory_space<vmem>>, vector<1x1x8x16xf32>,
    %71 = arith.truncf %67 : vector<8x16xf32> to vector<8x16xbf16>
    %cst_33 = arith.constant dense<0.000000e+00> : vector<8x8xf32>
    %72 = tpu.matmul %71, %56, %cst_33 {dimension_numbers = #tpu.dot_dimension_numbers<[1], [0], [0], [1], [0, 0, 1, 1], [], []>} : vector<8x16xbf16>, vector<16x8xbf16>, vector<8x8xf32> -> vector<8x8xf32>
    %73 = vector.extract_strided_slice %13 {offsets = [0, 24], sizes = [8, 8], strides = [1, 1]} : vector<8x32xbf16> to vector<8x8xbf16>
    %74 = vector.extract_strided_slice %14 {offsets = [0, 24], sizes = [16, 8], strides = [1, 1]} : vector<16x32xbf16> to vector<16x8xbf16>
    %75 = vector.extract_strided_slice %15 {offsets = [0, 24], sizes = [16, 8], strides = [1, 1]} : vector<16x32xbf16> to vector<16x8xbf16>
    %cst_34 = arith.constant dense<0.000000e+00> : vector<8x16xf32>
    %76 = tpu.matmul %73, %74, %cst_34 {dimension_numbers = #tpu.dot_dimension_numbers<[1], [1], [0], [0], [0, 0, 1, 0], [], []>} : vector<8x8xbf16>, vector<16x8xbf16>, vector<8x16xf32> -> vector<8x16xf32>
    %cst_35 = arith.constant dense<0xFF800000> : vector<8xf32>
    %77 = vector.multi_reduction <maximumf>, %76, %cst_35 [1] : vector<8x16xf32> to vector<8xf32>
    %78 = vector.shape_cast %77 : vector<8xf32> to vector<8x1xf32>
    %79 = vector.broadcast %78 : vector<8x1xf32> to vector<8x16xf32>
    %80 = arith.subf %76, %79 : vector<8x16xf32>
    %81 = math.exp %80 : vector<8x16xf32>
    %cst_36 = arith.constant dense<0.000000e+00> : vector<8xf32>
    %82 = vector.multi_reduction <add>, %81, %cst_36 [1] : vector<8x16xf32> to vector<8xf32>
    %83 = vector.shape_cast %82 : vector<8xf32> to vector<8x1xf32>
    %84 = tpu.reciprocal %83 : vector<8x1xf32> -> vector<8x1xf32>
    %85 = vector.broadcast %84 : vector<8x1xf32> to vector<8x16xf32>
    %86 = arith.mulf %81, %85 : vector<8x16xf32>
    %c0_37 = arith.constant 0 : index
    %c3 = arith.constant 3 : index
    %c0_38 = arith.constant 0 : index
    %c0_39 = arith.constant 0 : index
    %87 = vector.load %arg13[%c0_37, %c3, %c0_38, %c0_39] : memref<1x4x8x16xf32, #tpu.memory_space<vmem>>, vector<1x1x8x16xf32>
    %88 = vector.shape_cast %87 : vector<1x1x8x16xf32> to vector<8x16xf32>
    %89 = vector.shape_cast %86 : vector<8x16xf32> to vector<1x1x8x16xf32>
    tpu.vector_store %arg13[%c0_37, %c3, %c0_38, %c0_39], %89 {strides = array<i32>} : memref<1x4x8x16xf32, #tpu.memory_space<vmem>>, vector<1x1x8x16xf32>,
    %90 = arith.truncf %86 : vector<8x16xf32> to vector<8x16xbf16>
    %cst_40 = arith.constant dense<0.000000e+00> : vector<8x8xf32>
    %91 = tpu.matmul %90, %75, %cst_40 {dimension_numbers = #tpu.dot_dimension_numbers<[1], [0], [0], [1], [0, 0, 1, 1], [], []>} : vector<8x16xbf16>, vector<16x8xbf16>, vector<8x8xf32> -> vector<8x8xf32>
    %92 = tpu.concatenate %34, %53, %72, %91 in 1 : vector<8x8xf32>, vector<8x8xf32>, vector<8x8xf32>, vector<8x8xf32> -> vector<8x32xf32>
    %93 = arith.truncf %92 : vector<8x32xf32> to vector<8x32xbf16>
    %c0_41 = arith.constant 0 : index
    %c0_42 = arith.constant 0 : index
    %94 = vector.load %arg11[%c0_41, %c0_42] : memref<32x32xbf16, #tpu.memory_space<vmem>>, vector<32x32xbf16>
    %cst_43 = arith.constant dense<0.000000e+00> : vector<8x32xf32>
    %95 = tpu.matmul %93, %94, %cst_43 {dimension_numbers = #tpu.dot_dimension_numbers<[1], [0], [0], [1], [0, 0, 1, 1], [], []>} : vector<8x32xbf16>, vector<32x32xbf16>, vector<8x32xf32> -> vector<8x32xf32>
    %c0_44 = arith.constant 0 : index
    %c0_45 = arith.constant 0 : index
    %96 = vector.load %arg12[%c0_44, %c0_45] : memref<1x32xf32, #tpu.memory_space<vmem>>, vector<1x32xf32>
    %97 = vector.broadcast %96 : vector<1x32xf32> to vector<8x32xf32>
    %98 = arith.addf %95, %97 : vector<8x32xf32>
    %c0_46 = arith.constant 0 : index
    %c0_47 = arith.constant 0 : index
    %c0_48 = arith.constant 0 : index
    %99 = vector.load %arg14[%c0_46, %c0_47, %c0_48] : memref<1x8x32xf32, #tpu.memory_space<vmem>>, vector<1x8x32xf32>
    %100 = vector.shape_cast %99 : vector<1x8x32xf32> to vector<8x32xf32>
    %101 = vector.shape_cast %98 : vector<8x32xf32> to vector<1x8x32xf32>
    tpu.vector_store %arg14[%c0_46, %c0_47, %c0_48], %101 {strides = array<i32>} : memref<1x8x32xf32, #tpu.memory_space<vmem>>, vector<1x8x32xf32>,
    return
  }
  func.func @transform_0(%arg0: i32, %arg1: i32) -> (i32, i32, i32) {
    %c0_i32 = arith.constant 0 : i32
    %c0_i32_0 = arith.constant 0 : i32
    return %arg0, %arg1, %c0_i32 : i32, i32, i32
  }
  func.func @transform_1(%arg0: i32, %arg1: i32) -> (i32, i32, i32) {
    %c0_i32 = arith.constant 0 : i32
    %c0_i32_0 = arith.constant 0 : i32
    %c0_i32_1 = arith.constant 0 : i32
    return %arg0, %c0_i32, %c0_i32_0 : i32, i32, i32
  }
  func.func @transform_2(%arg0: i32, %arg1: i32) -> (i32, i32, i32) {
    %c0_i32 = arith.constant 0 : i32
    %c0_i32_0 = arith.constant 0 : i32
    %c0_i32_1 = arith.constant 0 : i32
    return %arg0, %c0_i32, %c0_i32_0 : i32, i32, i32
  }
  func.func @transform_3(%arg0: i32, %arg1: i32) -> (i32, i32) {
    %c0_i32 = arith.constant 0 : i32
    %c0_i32_0 = arith.constant 0 : i32
    %c0_i32_1 = arith.constant 0 : i32
    return %c0_i32, %c0_i32_0 : i32, i32
  }
  func.func @transform_4(%arg0: i32, %arg1: i32) -> (i32, i32) {
    %c0_i32 = arith.constant 0 : i32
    %c0_i32_0 = arith.constant 0 : i32
    %c0_i32_1 = arith.constant 0 : i32
    return %c0_i32, %c0_i32_0 : i32, i32
  }
  func.func @transform_5(%arg0: i32, %arg1: i32) -> (i32, i32) {
    %c0_i32 = arith.constant 0 : i32
    %c0_i32_0 = arith.constant 0 : i32
    %c0_i32_1 = arith.constant 0 : i32
    return %c0_i32, %c0_i32_0 : i32, i32
  }
  func.func @transform_6(%arg0: i32, %arg1: i32) -> (i32, i32) {
    %c0_i32 = arith.constant 0 : i32
    %c0_i32_0 = arith.constant 0 : i32
    %c0_i32_1 = arith.constant 0 : i32
    return %c0_i32, %c0_i32_0 : i32, i32
  }
  func.func @transform_7(%arg0: i32, %arg1: i32) -> (i32, i32) {
    %c0_i32 = arith.constant 0 : i32
    %c0_i32_0 = arith.constant 0 : i32
    %c0_i32_1 = arith.constant 0 : i32
    return %c0_i32, %c0_i32_0 : i32, i32
  }
  func.func @transform_8(%arg0: i32, %arg1: i32) -> (i32, i32) {
    %c0_i32 = arith.constant 0 : i32
    %c0_i32_0 = arith.constant 0 : i32
    %c0_i32_1 = arith.constant 0 : i32
    return %c0_i32, %c0_i32_0 : i32, i32
  }
  func.func @transform_9(%arg0: i32, %arg1: i32) -> (i32, i32) {
    %c0_i32 = arith.constant 0 : i32
    %c0_i32_0 = arith.constant 0 : i32
    %c0_i32_1 = arith.constant 0 : i32
    return %c0_i32, %c0_i32_0 : i32, i32
  }
  func.func @transform_10(%arg0: i32, %arg1: i32) -> (i32, i32) {
    %c0_i32 = arith.constant 0 : i32
    %c0_i32_0 = arith.constant 0 : i32
    %c0_i32_1 = arith.constant 0 : i32
    return %c0_i32, %c0_i32_0 : i32, i32
  }
  func.func @transform_11(%arg0: i32, %arg1: i32) -> (i32, i32, i32, i32) {
    %c0_i32 = arith.constant 0 : i32
    %c0_i32_0 = arith.constant 0 : i32
    %c0_i32_1 = arith.constant 0 : i32
    return %arg0, %c0_i32, %arg1, %c0_i32_0 : i32, i32, i32, i32
  }
  func.func @transform_12(%arg0: i32, %arg1: i32) -> (i32, i32, i32) {
    %c0_i32 = arith.constant 0 : i32
    %c0_i32_0 = arith.constant 0 : i32
    return %arg0, %arg1, %c0_i32 : i32, i32, i32
  }
}

</mosaic_0001>

<llo_original>
// kernel: tpu_custom_call.1
$region0: #{tpu_custom_call.1}
  #allocation0 [shape = 'u32[]', space=smem, size = 0x4, offset = 0x4, fixed_abs, tag = 'smem constant byte address 0x4 - core index']
  #allocation1 [shape = 'u32[144,128]{1,0:T(1,128)}', space=vmem, size = 0x12000, scoped, tag = 'internal scratch']
  #allocation2 [shape = 'bf16[16,32]{1,0:T(8,128)(2,1)}', space=vmem, size = 0x1000, scoped, tag = 'scratch operand']
  #allocation3 [shape = 'bf16[16,32]{1,0:T(8,128)(2,1)}', space=vmem, size = 0x1000, scoped, tag = 'scratch operand']
  %s0 = inlined_call_operand.hbm [shape: f32[2,16,32], index: 0, kind: input, shape index: {}]
  %s1 = inlined_call_operand.hbm [shape: f32[2,16,32], index: 1, kind: input, shape index: {}]
  %s2 = inlined_call_operand.hbm [shape: f32[2,16,32], index: 2, kind: input, shape index: {}]
  %s3 = inlined_call_operand.hbm [shape: bf16[32,32], index: 3, kind: input, shape index: {}]
  %s4 = inlined_call_operand.hbm [shape: f32[1,32], index: 4, kind: input, shape index: {}]
  %s5 = inlined_call_operand.hbm [shape: bf16[32,32], index: 5, kind: input, shape index: {}]
  %s6 = inlined_call_operand.hbm [shape: f32[1,32], index: 6, kind: input, shape index: {}]
  %s7 = inlined_call_operand.hbm [shape: bf16[32,32], index: 7, kind: input, shape index: {}]
  %s8 = inlined_call_operand.hbm [shape: f32[1,32], index: 8, kind: input, shape index: {}]
  %s9 = inlined_call_operand.vmem [shape: bf16[32,32], index: 9, kind: input, shape index: {}]
  %s10 = inlined_call_operand.vmem [shape: f32[1,32], index: 10, kind: input, shape index: {}]
  %s11 = inlined_call_operand.hbm [shape: f32[2,4,16,16], index: 11, kind: output, shape index: {0}]
  %s12 = inlined_call_operand.hbm [shape: f32[2,16,32], index: 12, kind: output, shape index: {1}]
  %13 = xla_tuple %s11, %s12
  %s14 = sld [smem:[#allocation0]]
  $region125: #{tpu_custom_call.1} parent=0
    _
  %s16 = ssub.s32 1, %s14
  %s17 = scalar_select 0, %s16, %s14
  $region1: #{tpu_custom_call.1} parent=0
    #allocation4 [shape = 'u8[8192]{0}', space=vmem, size = 0x2000, scoped, tag = 'input window, operand 0']
    #allocation5 [shape = 's32[2]{0}', space=sflag, size = 0x8, scoped, tag = 'scoped memory for tpu_custom_call.1']
    #allocation6 [shape = 's32[2]{0}', space=sflag, size = 0x8, scoped, tag = 'scoped memory for tpu_custom_call.1']
    #allocation7 [shape = 'u8[16384]{0}', space=vmem, size = 0x4000, scoped, tag = 'input window, operand 1']
    #allocation8 [shape = 's32[2]{0}', space=sflag, size = 0x8, scoped, tag = 'scoped memory for tpu_custom_call.1']
    #allocation9 [shape = 'u8[16384]{0}', space=vmem, size = 0x4000, scoped, tag = 'input window, operand 2']
    #allocation10 [shape = 'u8[8192]{0}', space=vmem, size = 0x2000, scoped, tag = 'input window, operand 3, single buffered']
    #allocation11 [shape = 's32[1]{0}', space=sflag, size = 0x4, scoped, tag = 'scoped memory for tpu_custom_call.1']
    #allocation12 [shape = 'u8[512]{0}', space=vmem, size = 0x400, scoped, tag = 'input window, operand 4, single buffered']
    #allocation13 [shape = 'u8[8192]{0}', space=vmem, size = 0x2000, scoped, tag = 'input window, operand 5, single buffered']
    #allocation14 [shape = 's32[1]{0}', space=sflag, size = 0x4, scoped, tag = 'scoped memory for tpu_custom_call.1']
    #allocation15 [shape = 'u8[512]{0}', space=vmem, size = 0x400, scoped, tag = 'input window, operand 6, single buffered']
    #allocation16 [shape = 'u8[8192]{0}', space=vmem, size = 0x2000, scoped, tag = 'input window, operand 7, single buffered']
    #allocation17 [shape = 's32[1]{0}', space=sflag, size = 0x4, scoped, tag = 'scoped memory for tpu_custom_call.1']
    #allocation18 [shape = 'u8[512]{0}', space=vmem, size = 0x400, scoped, tag = 'input window, operand 8, single buffered']
    #allocation19 [shape = 'u8[32768]{0}', space=vmem, size = 0x8000, scoped, tag = 'output window, operand 0']
    #allocation20 [shape = 'u8[8192]{0}', space=vmem, size = 0x2000, scoped, tag = 'output window, operand 1']
    #allocation21 [shape = 's32[2]{0}', space=sflag, size = 0x8, scoped, tag = 'scoped memory for tpu_custom_call.1']
    %18 = vsyncpa [#allocation5], 0
    %s19 = scalar_lea.sflag [#allocation5], 1
    %20 = vsyncpa %s19, 0
    %21 = vsyncpa [#allocation8], 0
    %s22 = scalar_lea.sflag [#allocation8], 1
    %23 = vsyncpa %s22, 0
    %24 = vsyncpa [#allocation11], 0
    %25 = vsyncpa [#allocation14], 0
    %26 = vsyncpa [#allocation17], 0
    %27 = vsyncpa [#allocation6], 0
    %s28 = scalar_lea.sflag [#allocation6], 1
    %29 = vsyncpa %s28, 0
    %30 = vsyncpa [#allocation21], 0
    %s31 = scalar_lea.sflag [#allocation21], 1
    %32 = vsyncpa %s31, 0
    loop: start=0, step=1, limit=6
    $region2: #{tpu_custom_call.1} parent=1 // loop_pre_header
      _
    $region3: #{tpu_custom_call.1} parent=1 // loop_header
      %s34 = sphi 0, %s38
      %p35 = scmp.ge.s32.totalorder %s34, 6
      %s41 = sphi 0, %s53
      %s42 = sphi 0, %s49
      %s43 = sphi 0, %s41
      %s44 = sphi 0, %s42
      %s45 = sphi 0, %s43
      %s46 = sphi 0, %s44
      %s58 = sphi 0, %s60
      %s61 = sphi 0, %s58
      %s62 = sphi 0, %s61
      %s78 = sphi 0, %s62
      %s84 = sphi 0, %s86
      %s87 = sphi 0, %s84
      %s88 = sphi 0, %s87
      %s104 = sphi 0, %s88
      %s110 = sphi 0, %s112
      %s113 = sphi 0, %s110
      %s114 = sphi 0, %s113
      %s130 = sphi 0, %s114
      %s134 = sphi 0, %s134
      %s136 = sphi 0, %s134
      %s137 = sphi 0, %s136
      %s151 = sphi 0, %s137
      %s155 = sphi 0, %s155
      %s157 = sphi 0, %s155
      %s158 = sphi 0, %s157
      %s172 = sphi 0, %s158
      %s176 = sphi 0, %s176
      %s178 = sphi 0, %s176
      %s179 = sphi 0, %s178
      %s193 = sphi 0, %s179
      %s197 = sphi 0, %s197
      %s199 = sphi 0, %s197
      %s200 = sphi 0, %s199
      %s214 = sphi 0, %s200
      %s218 = sphi 0, %s218
      %s220 = sphi 0, %s218
      %s221 = sphi 0, %s220
      %s235 = sphi 0, %s221
      %s239 = sphi 0, %s239
      %s241 = sphi 0, %s239
      %s242 = sphi 0, %s241
      %s256 = sphi 0, %s242
      %s260 = sphi 0, %s260
      %s262 = sphi 0, %s260
      %s263 = sphi 0, %s262
      %s277 = sphi 0, %s263
      %s281 = sphi 0, %s281
      %s283 = sphi 0, %s281
      %s284 = sphi 0, %s283
      %s298 = sphi 0, %s284
      %s306 = sphi 0, %s308
      %s309 = sphi 0, %s306
      %s310 = sphi 0, %s309
      %s326 = sphi 0, %s310
      %s334 = sphi 0, %s336
      %s337 = sphi 0, %s334
      %s338 = sphi 0, %s337
      %s354 = sphi 0, %s338
    $region4: #{tpu_custom_call.1} parent=1 // loop_header_branch
      %37 = sbr.rel (%p35) target = $region8
    $region5: #{tpu_custom_call.1} parent=1 // loop_body
      %s39 = ssub.s32 %s34, 1
      %s40 = ssub.s32 %s34, 2
      %s47 = sadd.s32 1, %s42
      %p48 = scmp.ge.s32.totalorder %s47, 2
      %s49 = scalar_select %p48, 0, %s47
      %s50 = sadd.s32 1, %s41
      %s51 = scalar_select %p48, %s50, %s41
      %p52 = scmp.ge.s32.totalorder %s51, 2
      %s53 = scalar_select %p52, 0, %s51
      %s54 = ssub.s32 %s41, %s53
      %s55 = ssub.s32 %s42, %s49
      %s56 = sor.u32 %s54, %s55
      %p57 = scmp.eq.s32.totalorder %s56, 0
      %s59 = sadd.s32 %s58, 1
      %s60 = scalar_select %p57, %s58, %s59
      %p63 = pneg %p57
      %p64 = scmp.eq.s32.totalorder %s34, 3
      %p65 = por %p63, %p64
      %p66 = scmp.ne.s32.totalorder %s58, %s61
      %p67 = scmp.eq.s32.totalorder %s34, 0
      %p68 = por %p66, %p67
      %p69 = scmp.ne.s32.totalorder %s58, %s61
      %p70 = scmp.eq.s32.totalorder %s39, 3
      %p71 = por %p69, %p70
      %p72 = scmp.ne.s32.totalorder %s61, %s62
      %p73 = scmp.eq.s32.totalorder %s39, 0
      %p74 = por %p72, %p73
      %p75 = scmp.ne.s32.totalorder %s61, %s62
      %p76 = scmp.eq.s32.totalorder %s40, 3
      %p77 = por %p75, %p76
      %p79 = scmp.ne.s32.totalorder %s62, %s78
      %p80 = scmp.eq.s32.totalorder %s40, 0
      %p81 = por %p79, %p80
      %s82 = ssub.s32 %s41, %s53
      %p83 = scmp.eq.s32.totalorder %s82, 0
      %s85 = sadd.s32 %s84, 1
      %s86 = scalar_select %p83, %s84, %s85
      %p89 = pneg %p83
      %p90 = scmp.eq.s32.totalorder %s34, 3
      %p91 = por %p89, %p90
      %p92 = scmp.ne.s32.totalorder %s84, %s87
      %p93 = scmp.eq.s32.totalorder %s34, 0
      %p94 = por %p92, %p93
      %p95 = scmp.ne.s32.totalorder %s84, %s87
      %p96 = scmp.eq.s32.totalorder %s39, 3
      %p97 = por %p95, %p96
      %p98 = scmp.ne.s32.totalorder %s87, %s88
      %p99 = scmp.eq.s32.totalorder %s39, 0
      %p100 = por %p98, %p99
      %p101 = scmp.ne.s32.totalorder %s87, %s88
      %p102 = scmp.eq.s32.totalorder %s40, 3
      %p103 = por %p101, %p102
      %p105 = scmp.ne.s32.totalorder %s88, %s104
      %p106 = scmp.eq.s32.totalorder %s40, 0
      %p107 = por %p105, %p106
      %s108 = ssub.s32 %s41, %s53
      %p109 = scmp.eq.s32.totalorder %s108, 0
      %s111 = sadd.s32 %s110, 1
      %s112 = scalar_select %p109, %s110, %s111
      %p115 = pneg %p109
      %p116 = scmp.eq.s32.totalorder %s34, 3
      %p117 = por %p115, %p116
      %p118 = scmp.ne.s32.totalorder %s110, %s113
      %p119 = scmp.eq.s32.totalorder %s34, 0
      %p120 = por %p118, %p119
      %p121 = scmp.ne.s32.totalorder %s110, %s113
      %p122 = scmp.eq.s32.totalorder %s39, 3
      %p123 = por %p121, %p122
      %p124 = scmp.ne.s32.totalorder %s113, %s114
      %p125 = scmp.eq.s32.totalorder %s39, 0
      %p126 = por %p124, %p125
      %p127 = scmp.ne.s32.totalorder %s113, %s114
      %p128 = scmp.eq.s32.totalorder %s40, 3
      %p129 = por %p127, %p128
      %p131 = scmp.ne.s32.totalorder %s114, %s130
      %p132 = scmp.eq.s32.totalorder %s40, 0
      %p133 = por %p131, %p132
      %s135 = sadd.s32 %s134, 1
      %p138 = scmp.eq.s32.totalorder %s34, 3
      %p139 = scmp.ne.s32.totalorder %s134, %s136
      %p140 = scmp.eq.s32.totalorder %s34, 0
      %p141 = por %p139, %p140
      %p142 = scmp.ne.s32.totalorder %s134, %s136
      %p143 = scmp.eq.s32.totalorder %s39, 3
      %p144 = por %p142, %p143
      %p145 = scmp.ne.s32.totalorder %s136, %s137
      %p146 = scmp.eq.s32.totalorder %s39, 0
      %p147 = por %p145, %p146
      %p148 = scmp.ne.s32.totalorder %s136, %s137
      %p149 = scmp.eq.s32.totalorder %s40, 3
      %p150 = por %p148, %p149
      %p152 = scmp.ne.s32.totalorder %s137, %s151
      %p153 = scmp.eq.s32.totalorder %s40, 0
      %p154 = por %p152, %p153
      %s156 = sadd.s32 %s155, 1
      %p159 = scmp.eq.s32.totalorder %s34, 3
      %p160 = scmp.ne.s32.totalorder %s155, %s157
      %p161 = scmp.eq.s32.totalorder %s34, 0
      %p162 = por %p160, %p161
      %p163 = scmp.ne.s32.totalorder %s155, %s157
      %p164 = scmp.eq.s32.totalorder %s39, 3
      %p165 = por %p163, %p164
      %p166 = scmp.ne.s32.totalorder %s157, %s158
      %p167 = scmp.eq.s32.totalorder %s39, 0
      %p168 = por %p166, %p167
      %p169 = scmp.ne.s32.totalorder %s157, %s158
      %p170 = scmp.eq.s32.totalorder %s40, 3
      %p171 = por %p169, %p170
      %p173 = scmp.ne.s32.totalorder %s158, %s172
      %p174 = scmp.eq.s32.totalorder %s40, 0
      %p175 = por %p173, %p174
      %s177 = sadd.s32 %s176, 1
      %p180 = scmp.eq.s32.totalorder %s34, 3
      %p181 = scmp.ne.s32.totalorder %s176, %s178
      %p182 = scmp.eq.s32.totalorder %s34, 0
      %p183 = por %p181, %p182
      %p184 = scmp.ne.s32.totalorder %s176, %s178
      %p185 = scmp.eq.s32.totalorder %s39, 3
      %p186 = por %p184, %p185
      %p187 = scmp.ne.s32.totalorder %s178, %s179
      %p188 = scmp.eq.s32.totalorder %s39, 0
      %p189 = por %p187, %p188
      %p190 = scmp.ne.s32.totalorder %s178, %s179
      %p191 = scmp.eq.s32.totalorder %s40, 3
      %p192 = por %p190, %p191
      %p194 = scmp.ne.s32.totalorder %s179, %s193
      %p195 = scmp.eq.s32.totalorder %s40, 0
      %p196 = por %p194, %p195
      %s198 = sadd.s32 %s197, 1
      %p201 = scmp.eq.s32.totalorder %s34, 3
      %p202 = scmp.ne.s32.totalorder %s197, %s199
      %p203 = scmp.eq.s32.totalorder %s34, 0
      %p204 = por %p202, %p203
      %p205 = scmp.ne.s32.totalorder %s197, %s199
      %p206 = scmp.eq.s32.totalorder %s39, 3
      %p207 = por %p205, %p206
      %p208 = scmp.ne.s32.totalorder %s199, %s200
      %p209 = scmp.eq.s32.totalorder %s39, 0
      %p210 = por %p208, %p209
      %p211 = scmp.ne.s32.totalorder %s199, %s200
      %p212 = scmp.eq.s32.totalorder %s40, 3
      %p213 = por %p211, %p212
      %p215 = scmp.ne.s32.totalorder %s200, %s214
      %p216 = scmp.eq.s32.totalorder %s40, 0
      %p217 = por %p215, %p216
      %s219 = sadd.s32 %s218, 1
      %p222 = scmp.eq.s32.totalorder %s34, 3
      %p223 = scmp.ne.s32.totalorder %s218, %s220
      %p224 = scmp.eq.s32.totalorder %s34, 0
      %p225 = por %p223, %p224
      %p226 = scmp.ne.s32.totalorder %s218, %s220
      %p227 = scmp.eq.s32.totalorder %s39, 3
      %p228 = por %p226, %p227
      %p229 = scmp.ne.s32.totalorder %s220, %s221
      %p230 = scmp.eq.s32.totalorder %s39, 0
      %p231 = por %p229, %p230
      %p232 = scmp.ne.s32.totalorder %s220, %s221
      %p233 = scmp.eq.s32.totalorder %s40, 3
      %p234 = por %p232, %p233
      %p236 = scmp.ne.s32.totalorder %s221, %s235
      %p237 = scmp.eq.s32.totalorder %s40, 0
      %p238 = por %p236, %p237
      %s240 = sadd.s32 %s239, 1
      %p243 = scmp.eq.s32.totalorder %s34, 3
      %p244 = scmp.ne.s32.totalorder %s239, %s241
      %p245 = scmp.eq.s32.totalorder %s34, 0
      %p246 = por %p244, %p245
      %p247 = scmp.ne.s32.totalorder %s239, %s241
      %p248 = scmp.eq.s32.totalorder %s39, 3
      %p249 = por %p247, %p248
      %p250 = scmp.ne.s32.totalorder %s241, %s242
      %p251 = scmp.eq.s32.totalorder %s39, 0
      %p252 = por %p250, %p251
      %p253 = scmp.ne.s32.totalorder %s241, %s242
      %p254 = scmp.eq.s32.totalorder %s40, 3
      %p255 = por %p253, %p254
      %p257 = scmp.ne.s32.totalorder %s242, %s256
      %p258 = scmp.eq.s32.totalorder %s40, 0
      %p259 = por %p257, %p258
      %s261 = sadd.s32 %s260, 1
      %p264 = scmp.eq.s32.totalorder %s34, 3
      %p265 = scmp.ne.s32.totalorder %s260, %s262
      %p266 = scmp.eq.s32.totalorder %s34, 0
      %p267 = por %p265, %p266
      %p268 = scmp.ne.s32.totalorder %s260, %s262
      %p269 = scmp.eq.s32.totalorder %s39, 3
      %p270 = por %p268, %p269
      %p271 = scmp.ne.s32.totalorder %s262, %s263
      %p272 = scmp.eq.s32.totalorder %s39, 0
      %p273 = por %p271, %p272
      %p274 = scmp.ne.s32.totalorder %s262, %s263
      %p275 = scmp.eq.s32.totalorder %s40, 3
      %p276 = por %p274, %p275
      %p278 = scmp.ne.s32.totalorder %s263, %s277
      %p279 = scmp.eq.s32.totalorder %s40, 0
      %p280 = por %p278, %p279
      %s282 = sadd.s32 %s281, 1
      %p285 = scmp.eq.s32.totalorder %s34, 3
      %p286 = scmp.ne.s32.totalorder %s281, %s283
      %p287 = scmp.eq.s32.totalorder %s34, 0
      %p288 = por %p286, %p287
      %p289 = scmp.ne.s32.totalorder %s281, %s283
      %p290 = scmp.eq.s32.totalorder %s39, 3
      %p291 = por %p289, %p290
      %p292 = scmp.ne.s32.totalorder %s283, %s284
      %p293 = scmp.eq.s32.totalorder %s39, 0
      %p294 = por %p292, %p293
      %p295 = scmp.ne.s32.totalorder %s283, %s284
      %p296 = scmp.eq.s32.totalorder %s40, 3
      %p297 = por %p295, %p296
      %p299 = scmp.ne.s32.totalorder %s284, %s298
      %p300 = scmp.eq.s32.totalorder %s40, 0
      %p301 = por %p299, %p300
      %s302 = ssub.s32 %s41, %s53
      %s303 = ssub.s32 %s42, %s49
      %s304 = sor.u32 %s302, %s303
      %p305 = scmp.eq.s32.totalorder %s304, 0
      %s307 = sadd.s32 %s306, 1
      %s308 = scalar_select %p305, %s306, %s307
      %p311 = pneg %p305
      %p312 = scmp.eq.s32.totalorder %s34, 3
      %p313 = por %p311, %p312
      %p314 = scmp.ne.s32.totalorder %s306, %s309
      %p315 = scmp.eq.s32.totalorder %s34, 0
      %p316 = por %p314, %p315
      %p317 = scmp.ne.s32.totalorder %s306, %s309
      %p318 = scmp.eq.s32.totalorder %s39, 3
      %p319 = por %p317, %p318
      %p320 = scmp.ne.s32.totalorder %s309, %s310
      %p321 = scmp.eq.s32.totalorder %s39, 0
      %p322 = por %p320, %p321
      %p323 = scmp.ne.s32.totalorder %s309, %s310
      %p324 = scmp.eq.s32.totalorder %s40, 3
      %p325 = por %p323, %p324
      %p327 = scmp.ne.s32.totalorder %s310, %s326
      %p328 = scmp.eq.s32.totalorder %s40, 0
      %p329 = por %p327, %p328
      %s330 = ssub.s32 %s41, %s53
      %s331 = ssub.s32 %s42, %s49
      %s332 = sor.u32 %s330, %s331
      %p333 = scmp.eq.s32.totalorder %s332, 0
      %s335 = sadd.s32 %s334, 1
      %s336 = scalar_select %p333, %s334, %s335
      %p339 = pneg %p333
      %p340 = scmp.eq.s32.totalorder %s34, 3
      %p341 = por %p339, %p340
      %p342 = scmp.ne.s32.totalorder %s334, %s337
      %p343 = scmp.eq.s32.totalorder %s34, 0
      %p344 = por %p342, %p343
      %p345 = scmp.ne.s32.totalorder %s334, %s337
      %p346 = scmp.eq.s32.totalorder %s39, 3
      %p347 = por %p345, %p346
      %p348 = scmp.ne.s32.totalorder %s337, %s338
      %p349 = scmp.eq.s32.totalorder %s39, 0
      %p350 = por %p348, %p349
      %p351 = scmp.ne.s32.totalorder %s337, %s338
      %p352 = scmp.eq.s32.totalorder %s40, 3
      %p353 = por %p351, %p352
      %p355 = scmp.ne.s32.totalorder %s338, %s354
      %p356 = scmp.eq.s32.totalorder %s40, 0
      %p357 = por %p355, %p356
      %p358 = scmp.le.s32.totalorder 1, %s34
      %p359 = scmp.lt.s32.totalorder %s34, 5
      %p360 = pnand %p358, %p359
      %p361 = pneg %p360
      // Predicated region
      $region9: #{tpu_custom_call.1} parent=5 // pred_check
        _
      $region10: #{tpu_custom_call.1} parent=5 // pred_check_branch
        %363 = sbr.rel (%p360) target = $region12
      $region11: #{tpu_custom_call.1} parent=5 // pred_region
        %s364 = ssub.s32 %s34, 1
        // Predicated region
        $region13: #{tpu_custom_call.1} parent=11 // pred_check
          %p365 = pneg %p147
        $region14: #{tpu_custom_call.1} parent=11 // pred_check_branch
          %367 = sbr.rel (%p365) target = $region16
        $region15: #{tpu_custom_call.1} parent=11 // pred_region
          %s369 = ssub.s32 256, 256
          %370 = vsyncadd [#allocation11], %s369
          %s371 = sshll.u32 [#allocation10], 4
          %s372 = int_to_ptr.vmem [resolvable:$true] %s371
          %377 = dma.hbm_to_vmem [thread:$0]  %s3, 256, %s372, [#allocation11], 64, 64, 4
        $region16: #{tpu_custom_call.1} parent=11 // pred_fallthru
          _
        // Predicated region
        $region17: #{tpu_custom_call.1} parent=11 // pred_check
          %p378 = pneg %p168
        $region18: #{tpu_custom_call.1} parent=11 // pred_check_branch
          %380 = sbr.rel (%p378) target = $region20
        $region19: #{tpu_custom_call.1} parent=11 // pred_region
          %s382 = ssub.s32 16, 16
          %383 = vsyncadd [#allocation11], %s382
          %s385 = sshll.u32 [#allocation12], 4
          %s386 = int_to_ptr.vmem [resolvable:$true] %s385
          %388 = dma.hbm_to_vmem [thread:$0]  %s4, 16, %s386, [#allocation11]
        $region20: #{tpu_custom_call.1} parent=11 // pred_fallthru
          _
        // Predicated region
        $region21: #{tpu_custom_call.1} parent=11 // pred_check
          %p389 = pneg %p189
        $region22: #{tpu_custom_call.1} parent=11 // pred_check_branch
          %391 = sbr.rel (%p389) target = $region24
        $region23: #{tpu_custom_call.1} parent=11 // pred_region
          %s393 = ssub.s32 256, 256
          %394 = vsyncadd [#allocation14], %s393
          %s395 = sshll.u32 [#allocation13], 4
          %s396 = int_to_ptr.vmem [resolvable:$true] %s395
          %401 = dma.hbm_to_vmem [thread:$0]  %s5, 256, %s396, [#allocation14], 64, 64, 4
        $region24: #{tpu_custom_call.1} parent=11 // pred_fallthru
          _
        // Predicated region
        $region25: #{tpu_custom_call.1} parent=11 // pred_check
          %p402 = pneg %p210
        $region26: #{tpu_custom_call.1} parent=11 // pred_check_branch
          %404 = sbr.rel (%p402) target = $region28
        $region27: #{tpu_custom_call.1} parent=11 // pred_region
          %s406 = ssub.s32 16, 16
          %407 = vsyncadd [#allocation14], %s406
          %s409 = sshll.u32 [#allocation15], 4
          %s410 = int_to_ptr.vmem [resolvable:$true] %s409
          %412 = dma.hbm_to_vmem [thread:$0]  %s6, 16, %s410, [#allocation14]
        $region28: #{tpu_custom_call.1} parent=11 // pred_fallthru
          _
        // Predicated region
        $region29: #{tpu_custom_call.1} parent=11 // pred_check
          %p413 = pneg %p231
        $region30: #{tpu_custom_call.1} parent=11 // pred_check_branch
          %415 = sbr.rel (%p413) target = $region32
        $region31: #{tpu_custom_call.1} parent=11 // pred_region
          %s417 = ssub.s32 256, 256
          %418 = vsyncadd [#allocation17], %s417
          %s419 = sshll.u32 [#allocation16], 4
          %s420 = int_to_ptr.vmem [resolvable:$true] %s419
          %425 = dma.hbm_to_vmem [thread:$0]  %s7, 256, %s420, [#allocation17], 64, 64, 4
        $region32: #{tpu_custom_call.1} parent=11 // pred_fallthru
          _
        // Predicated region
        $region33: #{tpu_custom_call.1} parent=11 // pred_check
          %p426 = pneg %p252
        $region34: #{tpu_custom_call.1} parent=11 // pred_check_branch
          %428 = sbr.rel (%p426) target = $region36
        $region35: #{tpu_custom_call.1} parent=11 // pred_region
          %s430 = ssub.s32 16, 16
          %431 = vsyncadd [#allocation17], %s430
          %s433 = sshll.u32 [#allocation18], 4
          %s434 = int_to_ptr.vmem [resolvable:$true] %s433
          %436 = dma.hbm_to_vmem [thread:$0]  %s8, 16, %s434, [#allocation17]
        $region36: #{tpu_custom_call.1} parent=11 // pred_fallthru
          _
        // Predicated region
        $region37: #{tpu_custom_call.1} parent=11 // pred_check
          %p437 = pneg %p273
        $region38: #{tpu_custom_call.1} parent=11 // pred_check_branch
          %439 = sbr.rel (%p437) target = $region40
        $region39: #{tpu_custom_call.1} parent=11 // pred_region
          _
        $region40: #{tpu_custom_call.1} parent=11 // pred_fallthru
          _
        // Predicated region
        $region41: #{tpu_custom_call.1} parent=11 // pred_check
          %p440 = pneg %p294
        $region42: #{tpu_custom_call.1} parent=11 // pred_check_branch
          %442 = sbr.rel (%p440) target = $region44
        $region43: #{tpu_custom_call.1} parent=11 // pred_region
          _
        $region44: #{tpu_custom_call.1} parent=11 // pred_fallthru
          _
      $region12: #{tpu_custom_call.1} parent=5 // pred_fallthru
        _
      %p443 = scmp.lt.s32.totalorder %s34, 4
      // Predicated region
      $region45: #{tpu_custom_call.1} parent=5 // pred_check
        %p444 = pneg %p443
      $region46: #{tpu_custom_call.1} parent=5 // pred_check_branch
        %446 = sbr.rel (%p444) target = $region48
      $region47: #{tpu_custom_call.1} parent=5 // pred_region
        // Predicated region
        $region49: #{tpu_custom_call.1} parent=47 // pred_check
          %p447 = pneg %p68
        $region50: #{tpu_custom_call.1} parent=47 // pred_check_branch
          %449 = sbr.rel (%p447) target = $region52
        $region51: #{tpu_custom_call.1} parent=47 // pred_region
          %s450 = sand.u32 %s58, 1
          %s451 = scalar_lea.sflag [#allocation5], %s450
          %s452 = sand.u32 %s58, 1
          %s453 = smul.addr %s452, 8
          %s454 = scalar_lea.vmem [#allocation4], %s453
          %s456 = ssub.s32 128, 128
          %457 = vsyncadd %s451, %s456
          %s458 = smul.addr %s41, 2
          %s459 = sadd.s32 %s42, %s458
          %s460 = smul.addr %s459, 128
          %s461 = scalar_lea.hbm %s0, %s460
          %s463 = sshll.u32 %s454, 4
          %s464 = int_to_ptr.vmem [resolvable:$true] %s463
          %466 = dma.hbm_to_vmem [thread:$0]  %s461, 128, %s464, %s451
        $region52: #{tpu_custom_call.1} parent=47 // pred_fallthru
          _
        // Predicated region
        $region53: #{tpu_custom_call.1} parent=47 // pred_check
          %p467 = pneg %p94
        $region54: #{tpu_custom_call.1} parent=47 // pred_check_branch
          %469 = sbr.rel (%p467) target = $region56
        $region55: #{tpu_custom_call.1} parent=47 // pred_region
          %s470 = sand.u32 %s34, 1
          %s471 = scalar_lea.sflag [#allocation8], %s470
          %s472 = sand.u32 %s84, 1
          %s473 = smul.addr %s472, 16
          %s474 = scalar_lea.vmem [#allocation7], %s473
          %s476 = ssub.s32 256, 256
          %477 = vsyncadd %s471, %s476
          %s478 = smul.addr %s41, 2
          %s479 = smul.addr %s478, 128
          %s480 = scalar_lea.hbm %s1, %s479
          %s481 = sshll.u32 %s474, 4
          %s482 = int_to_ptr.vmem [resolvable:$true] %s481
          %487 = dma.hbm_to_vmem [thread:$0]  %s480, 256, %s482, %s471, 128, 128, 8
        $region56: #{tpu_custom_call.1} parent=47 // pred_fallthru
          _
        // Predicated region
        $region57: #{tpu_custom_call.1} parent=47 // pred_check
          %p488 = pneg %p120
        $region58: #{tpu_custom_call.1} parent=47 // pred_check_branch
          %490 = sbr.rel (%p488) target = $region60
        $region59: #{tpu_custom_call.1} parent=47 // pred_region
          %s491 = sand.u32 %s34, 1
          %s492 = scalar_lea.sflag [#allocation8], %s491
          %s493 = sand.u32 %s110, 1
          %s494 = smul.addr %s493, 16
          %s495 = scalar_lea.vmem [#allocation9], %s494
          %s497 = ssub.s32 256, 256
          %498 = vsyncadd %s492, %s497
          %s499 = smul.addr %s41, 2
          %s500 = smul.addr %s499, 128
          %s501 = scalar_lea.hbm %s2, %s500
          %s502 = sshll.u32 %s495, 4
          %s503 = int_to_ptr.vmem [resolvable:$true] %s502
          %508 = dma.hbm_to_vmem [thread:$0]  %s501, 256, %s503, %s492, 128, 128, 8
        $region60: #{tpu_custom_call.1} parent=47 // pred_fallthru
          _
      $region48: #{tpu_custom_call.1} parent=5 // pred_fallthru
        _
      %p509 = scmp.le.s32.totalorder 1, %s34
      %p510 = scmp.lt.s32.totalorder %s34, 5
      %p511 = pnand %p509, %p510
      %p512 = pneg %p511
      // Predicated region
      $region61: #{tpu_custom_call.1} parent=5 // pred_check
        _
      $region62: #{tpu_custom_call.1} parent=5 // pred_check_branch
        %514 = sbr.rel (%p511) target = $region64
      $region63: #{tpu_custom_call.1} parent=5 // pred_region
        %s515 = ssub.s32 %s34, 1
        %s516 = sand.u32 %s61, 1
        %s517 = scalar_lea.sflag [#allocation5], %s516
        %s518 = sand.u32 %s61, 1
        %s519 = smul.addr %s518, 8
        %s520 = scalar_lea.vmem [#allocation4], %s519
        // Predicated region
        $region65: #{tpu_custom_call.1} parent=63 // pred_check
          %p521 = pneg %p74
        $region66: #{tpu_custom_call.1} parent=63 // pred_check_branch
          %523 = sbr.rel (%p521) target = $region68
        $region67: #{tpu_custom_call.1} parent=63 // pred_region
          %524 = dma.done %s517, 128
        $region68: #{tpu_custom_call.1} parent=63 // pred_fallthru
          _
        %s525 = sand.u32 %s39, 1
        %s526 = scalar_lea.sflag [#allocation8], %s525
        %s527 = sand.u32 %s87, 1
        %s528 = smul.addr %s527, 16
        %s529 = scalar_lea.vmem [#allocation7], %s528
        // Predicated region
        $region69: #{tpu_custom_call.1} parent=63 // pred_check
          %p530 = pneg %p100
        $region70: #{tpu_custom_call.1} parent=63 // pred_check_branch
          %532 = sbr.rel (%p530) target = $region72
        $region71: #{tpu_custom_call.1} parent=63 // pred_region
          %533 = dma.done %s526, 256
        $region72: #{tpu_custom_call.1} parent=63 // pred_fallthru
          _
        %s534 = sand.u32 %s39, 1
        %s535 = scalar_lea.sflag [#allocation8], %s534
        %s536 = sand.u32 %s113, 1
        %s537 = smul.addr %s536, 16
        %s538 = scalar_lea.vmem [#allocation9], %s537
        // Predicated region
        $region73: #{tpu_custom_call.1} parent=63 // pred_check
          %p539 = pneg %p126
        $region74: #{tpu_custom_call.1} parent=63 // pred_check_branch
          %541 = sbr.rel (%p539) target = $region76
        $region75: #{tpu_custom_call.1} parent=63 // pred_region
          %542 = dma.done %s535, 256
        $region76: #{tpu_custom_call.1} parent=63 // pred_fallthru
          _
        // Predicated region
        $region77: #{tpu_custom_call.1} parent=63 // pred_check
          %p543 = pneg %p147
        $region78: #{tpu_custom_call.1} parent=63 // pred_check_branch
          %545 = sbr.rel (%p543) target = $region80
        $region79: #{tpu_custom_call.1} parent=63 // pred_region
          %546 = dma.done [#allocation11], 256
        $region80: #{tpu_custom_call.1} parent=63 // pred_fallthru
          _
        // Predicated region
        $region81: #{tpu_custom_call.1} parent=63 // pred_check
          %p547 = pneg %p168
        $region82: #{tpu_custom_call.1} parent=63 // pred_check_branch
          %549 = sbr.rel (%p547) target = $region84
        $region83: #{tpu_custom_call.1} parent=63 // pred_region
          %550 = dma.done [#allocation11], 16
        $region84: #{tpu_custom_call.1} parent=63 // pred_fallthru
          _
        // Predicated region
        $region85: #{tpu_custom_call.1} parent=63 // pred_check
          %p551 = pneg %p189
        $region86: #{tpu_custom_call.1} parent=63 // pred_check_branch
          %553 = sbr.rel (%p551) target = $region88
        $region87: #{tpu_custom_call.1} parent=63 // pred_region
          %554 = dma.done [#allocation14], 256
        $region88: #{tpu_custom_call.1} parent=63 // pred_fallthru
          _
        // Predicated region
        $region89: #{tpu_custom_call.1} parent=63 // pred_check
          %p555 = pneg %p210
        $region90: #{tpu_custom_call.1} parent=63 // pred_check_branch
          %557 = sbr.rel (%p555) target = $region92
        $region91: #{tpu_custom_call.1} parent=63 // pred_region
          %558 = dma.done [#allocation14], 16
        $region92: #{tpu_custom_call.1} parent=63 // pred_fallthru
          _
        // Predicated region
        $region93: #{tpu_custom_call.1} parent=63 // pred_check
          %p559 = pneg %p231
        $region94: #{tpu_custom_call.1} parent=63 // pred_check_branch
          %561 = sbr.rel (%p559) target = $region96
        $region95: #{tpu_custom_call.1} parent=63 // pred_region
          %562 = dma.done [#allocation17], 256
        $region96: #{tpu_custom_call.1} parent=63 // pred_fallthru
          _
        // Predicated region
        $region97: #{tpu_custom_call.1} parent=63 // pred_check
          %p563 = pneg %p252
        $region98: #{tpu_custom_call.1} parent=63 // pred_check_branch
          %565 = sbr.rel (%p563) target = $region100
        $region99: #{tpu_custom_call.1} parent=63 // pred_region
          %566 = dma.done [#allocation17], 16
        $region100: #{tpu_custom_call.1} parent=63 // pred_fallthru
          _
        %s567 = sand.u32 %s61, 1
        %s568 = scalar_lea.sflag [#allocation5], %s567
        %s569 = sand.u32 %s61, 1
        %s570 = smul.addr %s569, 8
        %s571 = scalar_lea.vmem [#allocation4], %s570
        %p572 = pneg %p74
        %p573 = pneg %p71
        %s574 = sand.u32 %s39, 1
        %s575 = scalar_lea.sflag [#allocation8], %s574
        %s576 = sand.u32 %s87, 1
        %s577 = smul.addr %s576, 16
        %s578 = scalar_lea.vmem [#allocation7], %s577
        %p579 = pneg %p100
        %p580 = pneg %p97
        %s581 = sand.u32 %s39, 1
        %s582 = scalar_lea.sflag [#allocation8], %s581
        %s583 = sand.u32 %s113, 1
        %s584 = smul.addr %s583, 16
        %s585 = scalar_lea.vmem [#allocation9], %s584
        %p586 = pneg %p126
        %p587 = pneg %p123
        %p588 = pneg %p147
        %p589 = pneg %p144
        %p590 = pneg %p168
        %p591 = pneg %p165
        %p592 = pneg %p189
        %p593 = pneg %p186
        %p594 = pneg %p210
        %p595 = pneg %p207
        %p596 = pneg %p231
        %p597 = pneg %p228
        %p598 = pneg %p252
        %p599 = pneg %p249
        %p600 = pneg %p273
        %p601 = pneg %p270
        %p602 = pneg %p294
        %p603 = pneg %p291
        %p604 = pneg %p322
        %p605 = pneg %p319
        %s606 = sand.u32 %s309, 1
        %s607 = scalar_lea.sflag [#allocation6], %s606
        %s608 = sand.u32 %s309, 1
        %s609 = smul.addr %s608, 32
        %s610 = scalar_lea.vmem [#allocation19], %s609
        %p611 = pneg %p350
        %p612 = pneg %p347
        %s613 = sand.u32 %s337, 1
        %s614 = scalar_lea.sflag [#allocation21], %s613
        %s615 = sand.u32 %s337, 1
        %s616 = smul.addr %s615, 8
        %s617 = scalar_lea.vmem [#allocation20], %s616
        %p619 = scmp.eq.s32.totalorder %s44, 0
        // Predicated region
        $region101: #{tpu_custom_call.1} parent=63 // pred_check
          %p620 = pneg %p619
        $region102: #{tpu_custom_call.1} parent=63 // pred_check_branch
          %622 = sbr.rel (%p620) target = $region104
        $region103: #{tpu_custom_call.1} parent=63 // pred_region
          %v623 = vld [vmem:[%s529] sm:$0xff]
          %v624 = vld [vmem:[%s529 + $0x8] sm:$0xff]
          %v625 = vpack.c.bf16 %v624, %v623
          %v626 = vld [vmem:[%s538] sm:$0xff]
          %v627 = vld [vmem:[%s538 + $0x8] sm:$0xff]
          %v628 = vpack.c.bf16 %v627, %v626
          %v629 = vld [vmem:[#allocation13] sm:$0xf]
          %v630 = vld [vmem:[#allocation13 + $0x4] sm:$0xf]
          %v631 = vld [vmem:[#allocation13 + $0x8] sm:$0xf]
          %v632 = vld [vmem:[#allocation13 + $0xc] sm:$0xf]
          %v633 = vld [vmem:[#allocation15] sm:$0x1]
          %v635 = vlaneseq
          %v636 = vshrl.u32 %v635, 7
          %v637 = vsub.s32 0, %v636
          %v638 = vrot.slane %v633, %v637
          %v644 = vunpack.c.l.b16 %v629
          %v645 = vunpack.c.l.b16 %v630
          %v646 = vunpack.c.l.b16 %v631
          %v647 = vunpack.c.l.b16 %v632
          %v648 = vpack.c.b16 %v645, %v644
          %v649 = vpack.c.b16 %v647, %v646
          %vm652 = vcmask 261120
          %v654 = vsel %vm652, %v625, 0
          %656 = vmatprep.subr.bf16.mxu0 0
          %657 = vmatpush1.bf16.msra.mxu0 0
          %658 = vmatprep.subr.bf16.mxu0 0
          %659 = vmatpush1.bf16.msra.mxu0 0
          %660 = vmatprep.subr.bf16.mxu0 0
          %661 = vmatpush1.bf16.msra.mxu0 0
          %662 = vmatprep.subr.bf16.mxu0 0
          %663 = vmatpush1.bf16.msra.mxu0 0
          %664 = vmatprep.subr.bf16.mxu0 0
          %665 = vmatpush1.bf16.msra.mxu0 0
          %666 = vmatprep.subr.bf16.mxu0 0
          %667 = vmatpush1.bf16.msra.mxu0 0
          %668 = vmatprep.subr.bf16.mxu0 0
          %669 = vmatpush1.bf16.msra.mxu0 %v649
          %670 = vmatprep.subr.bf16.mxu0 0
          %671 = vmatpush1.bf16.msra.mxu0 %v648
          %672 = vmatprep.subr.bf16.mxu0 0
          %673 = vmatpush2.bf16.msra.mxu0 0
          %674 = vmatprep.subr.bf16.mxu0 0
          %675 = vmatpush2.bf16.msra.mxu0 0
          %676 = vmatprep.subr.bf16.mxu0 0
          %677 = vmatpush2.bf16.msra.mxu0 0
          %678 = vmatprep.subr.bf16.mxu0 0
          %679 = vmatpush2.bf16.msra.mxu0 0
          %680 = vmatprep.subr.bf16.mxu0 0
          %681 = vmatpush2.bf16.msra.mxu0 0
          %682 = vmatprep.subr.bf16.mxu0 0
          %683 = vmatpush2.bf16.msra.mxu0 0
          %684 = vmatprep.subr.bf16.mxu0 0
          %685 = vmatpush2.bf16.msra.mxu0 0
          %686 = vmatprep.subr.bf16.mxu0 0
          %687 = vmatpush2.bf16.msra.mxu0 0
          %688 = vmatprep.mubr.bf16.mxu0 0
          %689 = vmatmul.mubr.bf16.gmra.mxu0 %v654
          %v690 = vpop.f32.mrf.mxu0
          %v691 = vadd.f32 %v638, %v690
          %v692 = vpop.f32.mrf.mxu0
          %v693 = vpop.f32.mrf.mxu0
          %v694 = vadd.f32 %v638, %v693
          %v695 = vpop.f32.mrf.mxu0
          %696 = vdwg.mxu0
          %v697 = vld [vmem:[#allocation16] sm:$0xf]
          %v698 = vld [vmem:[#allocation16 + $0x4] sm:$0xf]
          %v699 = vld [vmem:[#allocation16 + $0x8] sm:$0xf]
          %v700 = vld [vmem:[#allocation16 + $0xc] sm:$0xf]
          %v701 = vld [vmem:[#allocation18] sm:$0x1]
          %v703 = vlaneseq
          %v704 = vshrl.u32 %v703, 7
          %v705 = vsub.s32 0, %v704
          %v706 = vrot.slane %v701, %v705
          %v712 = vunpack.c.l.b16 %v697
          %v713 = vunpack.c.l.b16 %v698
          %v714 = vunpack.c.l.b16 %v699
          %v715 = vunpack.c.l.b16 %v700
          %v716 = vpack.c.b16 %v713, %v712
          %v717 = vpack.c.b16 %v715, %v714
          %v721 = vsel %vm652, %v628, 0
          %723 = vmatprep.subr.bf16.mxu0 0
          %724 = vmatpush1.bf16.msra.mxu0 0
          %725 = vmatprep.subr.bf16.mxu0 0
          %726 = vmatpush1.bf16.msra.mxu0 0
          %727 = vmatprep.subr.bf16.mxu0 0
          %728 = vmatpush1.bf16.msra.mxu0 0
          %729 = vmatprep.subr.bf16.mxu0 0
          %730 = vmatpush1.bf16.msra.mxu0 0
          %731 = vmatprep.subr.bf16.mxu0 0
          %732 = vmatpush1.bf16.msra.mxu0 0
          %733 = vmatprep.subr.bf16.mxu0 0
          %734 = vmatpush1.bf16.msra.mxu0 0
          %735 = vmatprep.subr.bf16.mxu0 0
          %736 = vmatpush1.bf16.msra.mxu0 %v717
          %737 = vmatprep.subr.bf16.mxu0 0
          %738 = vmatpush1.bf16.msra.mxu0 %v716
          %739 = vmatprep.subr.bf16.mxu0 0
          %740 = vmatpush2.bf16.msra.mxu0 0
          %741 = vmatprep.subr.bf16.mxu0 0
          %742 = vmatpush2.bf16.msra.mxu0 0
          %743 = vmatprep.subr.bf16.mxu0 0
          %744 = vmatpush2.bf16.msra.mxu0 0
          %745 = vmatprep.subr.bf16.mxu0 0
          %746 = vmatpush2.bf16.msra.mxu0 0
          %747 = vmatprep.subr.bf16.mxu0 0
          %748 = vmatpush2.bf16.msra.mxu0 0
          %749 = vmatprep.subr.bf16.mxu0 0
          %750 = vmatpush2.bf16.msra.mxu0 0
          %751 = vmatprep.subr.bf16.mxu0 0
          %752 = vmatpush2.bf16.msra.mxu0 0
          %753 = vmatprep.subr.bf16.mxu0 0
          %754 = vmatpush2.bf16.msra.mxu0 0
          %755 = vmatprep.mubr.bf16.mxu0 0
          %756 = vmatmul.mubr.bf16.gmra.mxu0 %v721
          %v757 = vpop.f32.mrf.mxu0
          %v758 = vadd.f32 %v706, %v757
          %v759 = vpop.f32.mrf.mxu0
          %v760 = vpop.f32.mrf.mxu0
          %v761 = vadd.f32 %v706, %v760
          %v762 = vpop.f32.mrf.mxu0
          %763 = vdwg.mxu0
          %v764 = vpack.c.bf16 %v694, %v691
          %v766 = vunpack.c.l.b16 %v764
          %v767 = vunpack.c.h.b16 %v764
          %v768 = vpack.c.b16 %v766, %v766
          %v769 = vpack.c.b16 %v767, %v767
          %vm772 = vcmask 257024
          %773 = vst.msk [vmem:[#allocation2] sm:$0xf] %vm772, %v768
          %774 = vst.msk [vmem:[#allocation2 + $0x4] sm:$0xf] %vm772, %v769
          %v775 = vpack.c.bf16 %v761, %v758
          %v777 = vunpack.c.l.b16 %v775
          %v778 = vunpack.c.h.b16 %v775
          %v779 = vpack.c.b16 %v777, %v777
          %v780 = vpack.c.b16 %v778, %v778
          %783 = vst.msk [vmem:[#allocation3] sm:$0xf] %vm772, %v779
          %784 = vst.msk [vmem:[#allocation3 + $0x4] sm:$0xf] %vm772, %v780
        $region104: #{tpu_custom_call.1} parent=63 // pred_fallthru
          _
        %v785 = vld [vmem:[%s520] sm:$0xff]
        %v786 = vpack.c.bf16 %v785, %v785
        %v787 = vld [vmem:[#allocation10] sm:$0xf]
        %v788 = vld [vmem:[#allocation10 + $0x4] sm:$0xf]
        %v789 = vld [vmem:[#allocation10 + $0x8] sm:$0xf]
        %v790 = vld [vmem:[#allocation10 + $0xc] sm:$0xf]
        %v791 = vld [vmem:[#allocation12] sm:$0x1]
        %v793 = vlaneseq
        %v794 = vshrl.u32 %v793, 7
        %v795 = vsub.s32 0, %v794
        %v796 = vrot.slane %v791, %v795
        %v802 = vunpack.c.l.b16 %v787
        %v803 = vunpack.c.l.b16 %v788
        %v804 = vunpack.c.l.b16 %v789
        %v805 = vunpack.c.l.b16 %v790
        %v806 = vpack.c.b16 %v803, %v802
        %v807 = vpack.c.b16 %v805, %v804
        %vm810 = vcmask 261120
        %v812 = vsel %vm810, %v786, 0
        %814 = vmatprep.subr.bf16.mxu0 0
        %815 = vmatpush1.bf16.msra.mxu0 0
        %816 = vmatprep.subr.bf16.mxu0 0
        %817 = vmatpush1.bf16.msra.mxu0 0
        %818 = vmatprep.subr.bf16.mxu0 0
        %819 = vmatpush1.bf16.msra.mxu0 0
        %820 = vmatprep.subr.bf16.mxu0 0
        %821 = vmatpush1.bf16.msra.mxu0 0
        %822 = vmatprep.subr.bf16.mxu0 0
        %823 = vmatpush1.bf16.msra.mxu0 0
        %824 = vmatprep.subr.bf16.mxu0 0
        %825 = vmatpush1.bf16.msra.mxu0 0
        %826 = vmatprep.subr.bf16.mxu0 0
        %827 = vmatpush1.bf16.msra.mxu0 %v807
        %828 = vmatprep.subr.bf16.mxu0 0
        %829 = vmatpush1.bf16.msra.mxu0 %v806
        %830 = vmatprep.subr.bf16.mxu0 0
        %831 = vmatpush2.bf16.msra.mxu0 0
        %832 = vmatprep.subr.bf16.mxu0 0
        %833 = vmatpush2.bf16.msra.mxu0 0
        %834 = vmatprep.subr.bf16.mxu0 0
        %835 = vmatpush2.bf16.msra.mxu0 0
        %836 = vmatprep.subr.bf16.mxu0 0
        %837 = vmatpush2.bf16.msra.mxu0 0
        %838 = vmatprep.subr.bf16.mxu0 0
        %839 = vmatpush2.bf16.msra.mxu0 0
        %840 = vmatprep.subr.bf16.mxu0 0
        %841 = vmatpush2.bf16.msra.mxu0 0
        %842 = vmatprep.subr.bf16.mxu0 0
        %843 = vmatpush2.bf16.msra.mxu0 0
        %844 = vmatprep.subr.bf16.mxu0 0
        %845 = vmatpush2.bf16.msra.mxu0 0
        %846 = vmatprep.mubr.bf16.mxu0 0
        %847 = vmatmul.mubr.bf16.gmra.mxu0 %v812
        %v848 = vpop.f32.mrf.mxu0
        %v849 = vadd.f32 %v796, %v848
        %v850 = vpop.f32.mrf.mxu0
        %v851 = vpop.f32.mrf.mxu0
        %v852 = vpop.f32.mrf.mxu0
        %853 = vdwg.mxu0
        %v854 = vmul.f32 %v849, 0.35355338
        %v855 = vpack.c.bf16 %v854, %v854
        %v856 = vld [vmem:[#allocation2] sm:$0xf]
        %v857 = vld [vmem:[#allocation2 + $0x4] sm:$0xf]
        %v858 = vld [vmem:[#allocation3] sm:$0xf]
        %v859 = vld [vmem:[#allocation3 + $0x4] sm:$0xf]
        %v862 = vunpack.c.l.b16 %v856
        %v863 = vunpack.c.l.b16 %v857
        %v864 = vpack.c.b16 %v863, %v862
        %vm865 = vcmask 64512
        %v867 = vsel %vm865, %v855, 0
        %v870 = vsel %vm865, %v864, 0
        %872 = vmatprep.subr.bf16.mxu0 0
        %873 = vmatpush1.bf16.xpose.msra.mxu0 0
        %874 = vmatprep.subr.bf16.mxu0 0
        %875 = vmatpush1.bf16.xpose.msra.mxu0 0
        %876 = vmatprep.subr.bf16.mxu0 0
        %877 = vmatpush1.bf16.xpose.msra.mxu0 0
        %878 = vmatprep.subr.bf16.mxu0 0
        %879 = vmatpush1.bf16.xpose.msra.mxu0 0
        %880 = vmatprep.subr.bf16.mxu0 0
        %881 = vmatpush1.bf16.xpose.msra.mxu0 0
        %882 = vmatprep.subr.bf16.mxu0 0
        %883 = vmatpush1.bf16.xpose.msra.mxu0 0
        %884 = vmatprep.subr.bf16.mxu0 0
        %885 = vmatpush1.bf16.xpose.msra.mxu0 0
        %886 = vmatprep.subr.bf16.mxu0 0
        %887 = vmatpush1.bf16.xpose.msra.mxu0 %v870
        %888 = vmatprep.subr.bf16.mxu0 0
        %889 = vmatpush2.bf16.xpose.msra.mxu0 0
        %890 = vmatprep.subr.bf16.mxu0 0
        %891 = vmatpush2.bf16.xpose.msra.mxu0 0
        %892 = vmatprep.subr.bf16.mxu0 0
        %893 = vmatpush2.bf16.xpose.msra.mxu0 0
        %894 = vmatprep.subr.bf16.mxu0 0
        %895 = vmatpush2.bf16.xpose.msra.mxu0 0
        %896 = vmatprep.subr.bf16.mxu0 0
        %897 = vmatpush2.bf16.xpose.msra.mxu0 0
        %898 = vmatprep.subr.bf16.mxu0 0
        %899 = vmatpush2.bf16.xpose.msra.mxu0 0
        %900 = vmatprep.subr.bf16.mxu0 0
        %901 = vmatpush2.bf16.xpose.msra.mxu0 0
        %902 = vmatprep.subr.bf16.mxu0 0
        %903 = vmatpush2.bf16.xpose.msra.mxu0 0
        %904 = vmatprep.mubr.bf16.mxu0 0
        %905 = vmatmul.mubr.bf16.gmra.mxu0 %v867
        %v906 = vpop.f32.mrf.mxu0
        %v907 = vadd.f32 0.0, %v906
        %v908 = vpop.f32.mrf.mxu0
        %v909 = vpop.f32.mrf.mxu0
        %v910 = vpop.f32.mrf.mxu0
        %911 = vdwg.mxu0
        %vm912 = vcmask 130048
        %v913 = vsel %vm912, %v907, -inf
        %914 = vmax.xlane.f32.xlu0 %v913
        %v915 = vpop.xlane.xlu0 %914
        %v916 = vsub.f32 %v907, %v915
        %v917 = vmul.f32 %v916, 1.442695
        %v918 = vpow.pop %v917
        %v919 = vsel %vm912, %v918, 0.0
        %920 = vadd.xlane.f32.xlu0 %v919
        %v921 = vpop.xlane.xlu0 %920
        %v922 = vrcp.pop %v921
        %v923 = vmul.f32 %v918, %v922
        %924 = vst.msk [vmem:[%s610] sm:$0xff] %vm912, %v923
        %v925 = vpack.c.bf16 %v923, %v923
        %v928 = vunpack.c.l.b16 %v858
        %v929 = vunpack.c.l.b16 %v859
        %v930 = vpack.c.b16 %v929, %v928
        %v933 = vsel %vm912, %v925, 0
        %935 = vmatprep.subr.bf16.mxu0 0
        %936 = vmatpush1.bf16.msra.mxu0 0
        %937 = vmatprep.subr.bf16.mxu0 0
        %938 = vmatpush1.bf16.msra.mxu0 0
        %939 = vmatprep.subr.bf16.mxu0 0
        %940 = vmatpush1.bf16.msra.mxu0 0
        %941 = vmatprep.subr.bf16.mxu0 0
        %942 = vmatpush1.bf16.msra.mxu0 0
        %943 = vmatprep.subr.bf16.mxu0 0
        %944 = vmatpush1.bf16.msra.mxu0 0
        %945 = vmatprep.subr.bf16.mxu0 0
        %946 = vmatpush1.bf16.msra.mxu0 0
        %947 = vmatprep.subr.bf16.mxu0 0
        %948 = vmatpush1.bf16.msra.mxu0 0
        %949 = vmatprep.subr.bf16.mxu0 0
        %950 = vmatpush1.bf16.msra.mxu0 %v930
        %951 = vmatprep.subr.bf16.mxu0 0
        %952 = vmatpush2.bf16.msra.mxu0 0
        %953 = vmatprep.subr.bf16.mxu0 0
        %954 = vmatpush2.bf16.msra.mxu0 0
        %955 = vmatprep.subr.bf16.mxu0 0
        %956 = vmatpush2.bf16.msra.mxu0 0
        %957 = vmatprep.subr.bf16.mxu0 0
        %958 = vmatpush2.bf16.msra.mxu0 0
        %959 = vmatprep.subr.bf16.mxu0 0
        %960 = vmatpush2.bf16.msra.mxu0 0
        %961 = vmatprep.subr.bf16.mxu0 0
        %962 = vmatpush2.bf16.msra.mxu0 0
        %963 = vmatprep.subr.bf16.mxu0 0
        %964 = vmatpush2.bf16.msra.mxu0 0
        %965 = vmatprep.subr.bf16.mxu0 0
        %966 = vmatpush2.bf16.msra.mxu0 0
        %967 = vmatprep.mubr.bf16.mxu0 0
        %968 = vmatmul.mubr.bf16.gmra.mxu0 %v933
        %v969 = vpop.f32.mrf.mxu0
        %v970 = vadd.f32 0.0, %v969
        %v971 = vpop.f32.mrf.mxu0
        %v972 = vpop.f32.mrf.mxu0
        %v973 = vpop.f32.mrf.mxu0
        %974 = vdwg.mxu0
        %976 = vrot.lane.b32.xlu0 %v855, 120
        %v977 = vpop.permute.xlu0 %976
        %978 = vrot.lane.b32.xlu0 %v864, 120
        %v979 = vpop.permute.xlu0 %978
        %v981 = vsel %vm865, %v977, 0
        %v984 = vsel %vm865, %v979, 0
        %986 = vmatprep.subr.bf16.mxu0 0
        %987 = vmatpush1.bf16.xpose.msra.mxu0 0
        %988 = vmatprep.subr.bf16.mxu0 0
        %989 = vmatpush1.bf16.xpose.msra.mxu0 0
        %990 = vmatprep.subr.bf16.mxu0 0
        %991 = vmatpush1.bf16.xpose.msra.mxu0 0
        %992 = vmatprep.subr.bf16.mxu0 0
        %993 = vmatpush1.bf16.xpose.msra.mxu0 0
        %994 = vmatprep.subr.bf16.mxu0 0
        %995 = vmatpush1.bf16.xpose.msra.mxu0 0
        %996 = vmatprep.subr.bf16.mxu0 0
        %997 = vmatpush1.bf16.xpose.msra.mxu0 0
        %998 = vmatprep.subr.bf16.mxu0 0
        %999 = vmatpush1.bf16.xpose.msra.mxu0 0
        %1000 = vmatprep.subr.bf16.mxu0 0
        %1001 = vmatpush1.bf16.xpose.msra.mxu0 %v984
        %1002 = vmatprep.subr.bf16.mxu0 0
        %1003 = vmatpush2.bf16.xpose.msra.mxu0 0
        %1004 = vmatprep.subr.bf16.mxu0 0
        %1005 = vmatpush2.bf16.xpose.msra.mxu0 0
        %1006 = vmatprep.subr.bf16.mxu0 0
        %1007 = vmatpush2.bf16.xpose.msra.mxu0 0
        %1008 = vmatprep.subr.bf16.mxu0 0
        %1009 = vmatpush2.bf16.xpose.msra.mxu0 0
        %1010 = vmatprep.subr.bf16.mxu0 0
        %1011 = vmatpush2.bf16.xpose.msra.mxu0 0
        %1012 = vmatprep.subr.bf16.mxu0 0
        %1013 = vmatpush2.bf16.xpose.msra.mxu0 0
        %1014 = vmatprep.subr.bf16.mxu0 0
        %1015 = vmatpush2.bf16.xpose.msra.mxu0 0
        %1016 = vmatprep.subr.bf16.mxu0 0
        %1017 = vmatpush2.bf16.xpose.msra.mxu0 0
        %1018 = vmatprep.mubr.bf16.mxu0 0
        %1019 = vmatmul.mubr.bf16.gmra.mxu0 %v981
        %v1020 = vpop.f32.mrf.mxu0
        %v1021 = vadd.f32 0.0, %v1020
        %v1022 = vpop.f32.mrf.mxu0
        %v1023 = vpop.f32.mrf.mxu0
        %v1024 = vpop.f32.mrf.mxu0
        %1025 = vdwg.mxu0
        %v1026 = vsel %vm912, %v1021, -inf
        %1027 = vmax.xlane.f32.xlu0 %v1026
        %v1028 = vpop.xlane.xlu0 %1027
        %v1029 = vsub.f32 %v1021, %v1028
        %v1030 = vmul.f32 %v1029, 1.442695
        %v1031 = vpow.pop %v1030
        %v1032 = vsel %vm912, %v1031, 0.0
        %1033 = vadd.xlane.f32.xlu0 %v1032
        %v1034 = vpop.xlane.xlu0 %1033
        %v1035 = vrcp.pop %v1034
        %v1036 = vmul.f32 %v1031, %v1035
        %s1037 = scalar_lea.vmem %s610, 8 [#allocation19]
        %1038 = vst.msk [vmem:[%s1037] sm:$0xff] %vm912, %v1036
        %v1039 = vpack.c.bf16 %v1036, %v1036
        %1040 = vrot.lane.b32.xlu0 %v930, 120
        %v1041 = vpop.permute.xlu0 %1040
        %v1044 = vsel %vm912, %v1039, 0
        %1046 = vmatprep.subr.bf16.mxu0 0
        %1047 = vmatpush1.bf16.msra.mxu0 0
        %1048 = vmatprep.subr.bf16.mxu0 0
        %1049 = vmatpush1.bf16.msra.mxu0 0
        %1050 = vmatprep.subr.bf16.mxu0 0
        %1051 = vmatpush1.bf16.msra.mxu0 0
        %1052 = vmatprep.subr.bf16.mxu0 0
        %1053 = vmatpush1.bf16.msra.mxu0 0
        %1054 = vmatprep.subr.bf16.mxu0 0
        %1055 = vmatpush1.bf16.msra.mxu0 0
        %1056 = vmatprep.subr.bf16.mxu0 0
        %1057 = vmatpush1.bf16.msra.mxu0 0
        %1058 = vmatprep.subr.bf16.mxu0 0
        %1059 = vmatpush1.bf16.msra.mxu0 0
        %1060 = vmatprep.subr.bf16.mxu0 0
        %1061 = vmatpush1.bf16.msra.mxu0 %v1041
        %1062 = vmatprep.subr.bf16.mxu0 0
        %1063 = vmatpush2.bf16.msra.mxu0 0
        %1064 = vmatprep.subr.bf16.mxu0 0
        %1065 = vmatpush2.bf16.msra.mxu0 0
        %1066 = vmatprep.subr.bf16.mxu0 0
        %1067 = vmatpush2.bf16.msra.mxu0 0
        %1068 = vmatprep.subr.bf16.mxu0 0
        %1069 = vmatpush2.bf16.msra.mxu0 0
        %1070 = vmatprep.subr.bf16.mxu0 0
        %1071 = vmatpush2.bf16.msra.mxu0 0
        %1072 = vmatprep.subr.bf16.mxu0 0
        %1073 = vmatpush2.bf16.msra.mxu0 0
        %1074 = vmatprep.subr.bf16.mxu0 0
        %1075 = vmatpush2.bf16.msra.mxu0 0
        %1076 = vmatprep.subr.bf16.mxu0 0
        %1077 = vmatpush2.bf16.msra.mxu0 0
        %1078 = vmatprep.mubr.bf16.mxu0 0
        %1079 = vmatmul.mubr.bf16.gmra.mxu0 %v1044
        %v1080 = vpop.f32.mrf.mxu0
        %v1081 = vadd.f32 0.0, %v1080
        %v1082 = vpop.f32.mrf.mxu0
        %v1083 = vpop.f32.mrf.mxu0
        %v1084 = vpop.f32.mrf.mxu0
        %1085 = vdwg.mxu0
        %1086 = vrot.lane.b32.xlu0 %v855, 112
        %v1087 = vpop.permute.xlu0 %1086
        %1088 = vrot.lane.b32.xlu0 %v864, 112
        %v1089 = vpop.permute.xlu0 %1088
        %v1091 = vsel %vm865, %v1087, 0
        %v1094 = vsel %vm865, %v1089, 0
        %1096 = vmatprep.subr.bf16.mxu0 0
        %1097 = vmatpush1.bf16.xpose.msra.mxu0 0
        %1098 = vmatprep.subr.bf16.mxu0 0
        %1099 = vmatpush1.bf16.xpose.msra.mxu0 0
        %1100 = vmatprep.subr.bf16.mxu0 0
        %1101 = vmatpush1.bf16.xpose.msra.mxu0 0
        %1102 = vmatprep.subr.bf16.mxu0 0
        %1103 = vmatpush1.bf16.xpose.msra.mxu0 0
        %1104 = vmatprep.subr.bf16.mxu0 0
        %1105 = vmatpush1.bf16.xpose.msra.mxu0 0
        %1106 = vmatprep.subr.bf16.mxu0 0
        %1107 = vmatpush1.bf16.xpose.msra.mxu0 0
        %1108 = vmatprep.subr.bf16.mxu0 0
        %1109 = vmatpush1.bf16.xpose.msra.mxu0 0
        %1110 = vmatprep.subr.bf16.mxu0 0
        %1111 = vmatpush1.bf16.xpose.msra.mxu0 %v1094
        %1112 = vmatprep.subr.bf16.mxu0 0
        %1113 = vmatpush2.bf16.xpose.msra.mxu0 0
        %1114 = vmatprep.subr.bf16.mxu0 0
        %1115 = vmatpush2.bf16.xpose.msra.mxu0 0
        %1116 = vmatprep.subr.bf16.mxu0 0
        %1117 = vmatpush2.bf16.xpose.msra.mxu0 0
        %1118 = vmatprep.subr.bf16.mxu0 0
        %1119 = vmatpush2.bf16.xpose.msra.mxu0 0
        %1120 = vmatprep.subr.bf16.mxu0 0
        %1121 = vmatpush2.bf16.xpose.msra.mxu0 0
        %1122 = vmatprep.subr.bf16.mxu0 0
        %1123 = vmatpush2.bf16.xpose.msra.mxu0 0
        %1124 = vmatprep.subr.bf16.mxu0 0
        %1125 = vmatpush2.bf16.xpose.msra.mxu0 0
        %1126 = vmatprep.subr.bf16.mxu0 0
        %1127 = vmatpush2.bf16.xpose.msra.mxu0 0
        %1128 = vmatprep.mubr.bf16.mxu0 0
        %1129 = vmatmul.mubr.bf16.gmra.mxu0 %v1091
        %v1130 = vpop.f32.mrf.mxu0
        %v1131 = vadd.f32 0.0, %v1130
        %v1132 = vpop.f32.mrf.mxu0
        %v1133 = vpop.f32.mrf.mxu0
        %v1134 = vpop.f32.mrf.mxu0
        %1135 = vdwg.mxu0
        %v1136 = vsel %vm912, %v1131, -inf
        %1137 = vmax.xlane.f32.xlu0 %v1136
        %v1138 = vpop.xlane.xlu0 %1137
        %v1139 = vsub.f32 %v1131, %v1138
        %v1140 = vmul.f32 %v1139, 1.442695
        %v1141 = vpow.pop %v1140
        %v1142 = vsel %vm912, %v1141, 0.0
        %1143 = vadd.xlane.f32.xlu0 %v1142
        %v1144 = vpop.xlane.xlu0 %1143
        %v1145 = vrcp.pop %v1144
        %v1146 = vmul.f32 %v1141, %v1145
        %s1147 = scalar_lea.vmem %s610, 16 [#allocation19]
        %1148 = vst.msk [vmem:[%s1147] sm:$0xff] %vm912, %v1146
        %v1149 = vpack.c.bf16 %v1146, %v1146
        %1150 = vrot.lane.b32.xlu0 %v930, 112
        %v1151 = vpop.permute.xlu0 %1150
        %v1154 = vsel %vm912, %v1149, 0
        %1156 = vmatprep.subr.bf16.mxu0 0
        %1157 = vmatpush1.bf16.msra.mxu0 0
        %1158 = vmatprep.subr.bf16.mxu0 0
        %1159 = vmatpush1.bf16.msra.mxu0 0
        %1160 = vmatprep.subr.bf16.mxu0 0
        %1161 = vmatpush1.bf16.msra.mxu0 0
        %1162 = vmatprep.subr.bf16.mxu0 0
        %1163 = vmatpush1.bf16.msra.mxu0 0
        %1164 = vmatprep.subr.bf16.mxu0 0
        %1165 = vmatpush1.bf16.msra.mxu0 0
        %1166 = vmatprep.subr.bf16.mxu0 0
        %1167 = vmatpush1.bf16.msra.mxu0 0
        %1168 = vmatprep.subr.bf16.mxu0 0
        %1169 = vmatpush1.bf16.msra.mxu0 0
        %1170 = vmatprep.subr.bf16.mxu0 0
        %1171 = vmatpush1.bf16.msra.mxu0 %v1151
        %1172 = vmatprep.subr.bf16.mxu0 0
        %1173 = vmatpush2.bf16.msra.mxu0 0
        %1174 = vmatprep.subr.bf16.mxu0 0
        %1175 = vmatpush2.bf16.msra.mxu0 0
        %1176 = vmatprep.subr.bf16.mxu0 0
        %1177 = vmatpush2.bf16.msra.mxu0 0
        %1178 = vmatprep.subr.bf16.mxu0 0
        %1179 = vmatpush2.bf16.msra.mxu0 0
        %1180 = vmatprep.subr.bf16.mxu0 0
        %1181 = vmatpush2.bf16.msra.mxu0 0
        %1182 = vmatprep.subr.bf16.mxu0 0
        %1183 = vmatpush2.bf16.msra.mxu0 0
        %1184 = vmatprep.subr.bf16.mxu0 0
        %1185 = vmatpush2.bf16.msra.mxu0 0
        %1186 = vmatprep.subr.bf16.mxu0 0
        %1187 = vmatpush2.bf16.msra.mxu0 0
        %1188 = vmatprep.mubr.bf16.mxu0 0
        %1189 = vmatmul.mubr.bf16.gmra.mxu0 %v1154
        %v1190 = vpop.f32.mrf.mxu0
        %v1191 = vadd.f32 0.0, %v1190
        %v1192 = vpop.f32.mrf.mxu0
        %v1193 = vpop.f32.mrf.mxu0
        %v1194 = vpop.f32.mrf.mxu0
        %1195 = vdwg.mxu0
        %1196 = vrot.lane.b32.xlu0 %v855, 104
        %v1197 = vpop.permute.xlu0 %1196
        %1198 = vrot.lane.b32.xlu0 %v864, 104
        %v1199 = vpop.permute.xlu0 %1198
        %v1201 = vsel %vm865, %v1197, 0
        %v1204 = vsel %vm865, %v1199, 0
        %1206 = vmatprep.subr.bf16.mxu0 0
        %1207 = vmatpush1.bf16.xpose.msra.mxu0 0
        %1208 = vmatprep.subr.bf16.mxu0 0
        %1209 = vmatpush1.bf16.xpose.msra.mxu0 0
        %1210 = vmatprep.subr.bf16.mxu0 0
        %1211 = vmatpush1.bf16.xpose.msra.mxu0 0
        %1212 = vmatprep.subr.bf16.mxu0 0
        %1213 = vmatpush1.bf16.xpose.msra.mxu0 0
        %1214 = vmatprep.subr.bf16.mxu0 0
        %1215 = vmatpush1.bf16.xpose.msra.mxu0 0
        %1216 = vmatprep.subr.bf16.mxu0 0
        %1217 = vmatpush1.bf16.xpose.msra.mxu0 0
        %1218 = vmatprep.subr.bf16.mxu0 0
        %1219 = vmatpush1.bf16.xpose.msra.mxu0 0
        %1220 = vmatprep.subr.bf16.mxu0 0
        %1221 = vmatpush1.bf16.xpose.msra.mxu0 %v1204
        %1222 = vmatprep.subr.bf16.mxu0 0
        %1223 = vmatpush2.bf16.xpose.msra.mxu0 0
        %1224 = vmatprep.subr.bf16.mxu0 0
        %1225 = vmatpush2.bf16.xpose.msra.mxu0 0
        %1226 = vmatprep.subr.bf16.mxu0 0
        %1227 = vmatpush2.bf16.xpose.msra.mxu0 0
        %1228 = vmatprep.subr.bf16.mxu0 0
        %1229 = vmatpush2.bf16.xpose.msra.mxu0 0
        %1230 = vmatprep.subr.bf16.mxu0 0
        %1231 = vmatpush2.bf16.xpose.msra.mxu0 0
        %1232 = vmatprep.subr.bf16.mxu0 0
        %1233 = vmatpush2.bf16.xpose.msra.mxu0 0
        %1234 = vmatprep.subr.bf16.mxu0 0
        %1235 = vmatpush2.bf16.xpose.msra.mxu0 0
        %1236 = vmatprep.subr.bf16.mxu0 0
        %1237 = vmatpush2.bf16.xpose.msra.mxu0 0
        %1238 = vmatprep.mubr.bf16.mxu0 0
        %1239 = vmatmul.mubr.bf16.gmra.mxu0 %v1201
        %v1240 = vpop.f32.mrf.mxu0
        %v1241 = vadd.f32 0.0, %v1240
        %v1242 = vpop.f32.mrf.mxu0
        %v1243 = vpop.f32.mrf.mxu0
        %v1244 = vpop.f32.mrf.mxu0
        %1245 = vdwg.mxu0
        %v1246 = vsel %vm912, %v1241, -inf
        %1247 = vmax.xlane.f32.xlu0 %v1246
        %v1248 = vpop.xlane.xlu0 %1247
        %v1249 = vsub.f32 %v1241, %v1248
        %v1250 = vmul.f32 %v1249, 1.442695
        %v1251 = vpow.pop %v1250
        %v1252 = vsel %vm912, %v1251, 0.0
        %1253 = vadd.xlane.f32.xlu0 %v1252
        %v1254 = vpop.xlane.xlu0 %1253
        %v1255 = vrcp.pop %v1254
        %v1256 = vmul.f32 %v1251, %v1255
        %s1257 = scalar_lea.vmem %s610, 24 [#allocation19]
        %1258 = vst.msk [vmem:[%s1257] sm:$0xff] %vm912, %v1256
        %v1259 = vpack.c.bf16 %v1256, %v1256
        %1260 = vrot.lane.b32.xlu0 %v930, 104
        %v1261 = vpop.permute.xlu0 %1260
        %v1264 = vsel %vm912, %v1259, 0
        %1266 = vmatprep.subr.bf16.mxu0 0
        %1267 = vmatpush1.bf16.msra.mxu0 0
        %1268 = vmatprep.subr.bf16.mxu0 0
        %1269 = vmatpush1.bf16.msra.mxu0 0
        %1270 = vmatprep.subr.bf16.mxu0 0
        %1271 = vmatpush1.bf16.msra.mxu0 0
        %1272 = vmatprep.subr.bf16.mxu0 0
        %1273 = vmatpush1.bf16.msra.mxu0 0
        %1274 = vmatprep.subr.bf16.mxu0 0
        %1275 = vmatpush1.bf16.msra.mxu0 0
        %1276 = vmatprep.subr.bf16.mxu0 0
        %1277 = vmatpush1.bf16.msra.mxu0 0
        %1278 = vmatprep.subr.bf16.mxu0 0
        %1279 = vmatpush1.bf16.msra.mxu0 0
        %1280 = vmatprep.subr.bf16.mxu0 0
        %1281 = vmatpush1.bf16.msra.mxu0 %v1261
        %1282 = vmatprep.subr.bf16.mxu0 0
        %1283 = vmatpush2.bf16.msra.mxu0 0
        %1284 = vmatprep.subr.bf16.mxu0 0
        %1285 = vmatpush2.bf16.msra.mxu0 0
        %1286 = vmatprep.subr.bf16.mxu0 0
        %1287 = vmatpush2.bf16.msra.mxu0 0
        %1288 = vmatprep.subr.bf16.mxu0 0
        %1289 = vmatpush2.bf16.msra.mxu0 0
        %1290 = vmatprep.subr.bf16.mxu0 0
        %1291 = vmatpush2.bf16.msra.mxu0 0
        %1292 = vmatprep.subr.bf16.mxu0 0
        %1293 = vmatpush2.bf16.msra.mxu0 0
        %1294 = vmatprep.subr.bf16.mxu0 0
        %1295 = vmatpush2.bf16.msra.mxu0 0
        %1296 = vmatprep.subr.bf16.mxu0 0
        %1297 = vmatpush2.bf16.msra.mxu0 0
        %1298 = vmatprep.mubr.bf16.mxu0 0
        %1299 = vmatmul.mubr.bf16.gmra.mxu0 %v1264
        %v1300 = vpop.f32.mrf.mxu0
        %v1301 = vadd.f32 0.0, %v1300
        %v1302 = vpop.f32.mrf.mxu0
        %v1303 = vpop.f32.mrf.mxu0
        %v1304 = vpop.f32.mrf.mxu0
        %1305 = vdwg.mxu0
        %1307 = vrot.lane.b32.xlu0 %v1081, 8
        %v1308 = vpop.permute.xlu0 %1307
        %1311 = vrot.lane.b32.xlu0 %v1191, 16
        %v1312 = vpop.permute.xlu0 %1311
        %1315 = vrot.lane.b32.xlu0 %v1301, 24
        %v1316 = vpop.permute.xlu0 %1315
        %v1318 = vsel %vm865, %v970, %v1308
        %v1319 = vsel %vm912, %v1318, %v1312
        %vm1320 = vcmask 195584
        %v1321 = vsel %vm1320, %v1319, %v1316
        %v1322 = vpack.c.bf16 %v1321, %v1321
        %v1323 = vld [vmem:[%s9] sm:$0xf]
        %v1324 = vld [vmem:[%s9 + $0x4] sm:$0xf]
        %v1325 = vld [vmem:[%s9 + $0x8] sm:$0xf]
        %v1326 = vld [vmem:[%s9 + $0xc] sm:$0xf]
        %v1327 = vld [vmem:[%s10] sm:$0x1]
        %v1329 = vlaneseq
        %v1330 = vshrl.u32 %v1329, 7
        %v1331 = vsub.s32 0, %v1330
        %v1332 = vrot.slane %v1327, %v1331
        %v1338 = vunpack.c.l.b16 %v1323
        %v1339 = vunpack.c.l.b16 %v1324
        %v1340 = vunpack.c.l.b16 %v1325
        %v1341 = vunpack.c.l.b16 %v1326
        %v1342 = vpack.c.b16 %v1339, %v1338
        %v1343 = vpack.c.b16 %v1341, %v1340
        %v1347 = vsel %vm810, %v1322, 0
        %1349 = vmatprep.subr.bf16.mxu0 0
        %1350 = vmatpush1.bf16.msra.mxu0 0
        %1351 = vmatprep.subr.bf16.mxu0 0
        %1352 = vmatpush1.bf16.msra.mxu0 0
        %1353 = vmatprep.subr.bf16.mxu0 0
        %1354 = vmatpush1.bf16.msra.mxu0 0
        %1355 = vmatprep.subr.bf16.mxu0 0
        %1356 = vmatpush1.bf16.msra.mxu0 0
        %1357 = vmatprep.subr.bf16.mxu0 0
        %1358 = vmatpush1.bf16.msra.mxu0 0
        %1359 = vmatprep.subr.bf16.mxu0 0
        %1360 = vmatpush1.bf16.msra.mxu0 0
        %1361 = vmatprep.subr.bf16.mxu0 0
        %1362 = vmatpush1.bf16.msra.mxu0 %v1343
        %1363 = vmatprep.subr.bf16.mxu0 0
        %1364 = vmatpush1.bf16.msra.mxu0 %v1342
        %1365 = vmatprep.subr.bf16.mxu0 0
        %1366 = vmatpush2.bf16.msra.mxu0 0
        %1367 = vmatprep.subr.bf16.mxu0 0
        %1368 = vmatpush2.bf16.msra.mxu0 0
        %1369 = vmatprep.subr.bf16.mxu0 0
        %1370 = vmatpush2.bf16.msra.mxu0 0
        %1371 = vmatprep.subr.bf16.mxu0 0
        %1372 = vmatpush2.bf16.msra.mxu0 0
        %1373 = vmatprep.subr.bf16.mxu0 0
        %1374 = vmatpush2.bf16.msra.mxu0 0
        %1375 = vmatprep.subr.bf16.mxu0 0
        %1376 = vmatpush2.bf16.msra.mxu0 0
        %1377 = vmatprep.subr.bf16.mxu0 0
        %1378 = vmatpush2.bf16.msra.mxu0 0
        %1379 = vmatprep.subr.bf16.mxu0 0
        %1380 = vmatpush2.bf16.msra.mxu0 0
        %1381 = vmatprep.mubr.bf16.mxu0 0
        %1382 = vmatmul.mubr.bf16.gmra.mxu0 %v1347
        %v1383 = vpop.f32.mrf.mxu0
        %v1384 = vadd.f32 %v1332, %v1383
        %v1385 = vpop.f32.mrf.mxu0
        %v1386 = vpop.f32.mrf.mxu0
        %v1387 = vpop.f32.mrf.mxu0
        %1388 = vdwg.mxu0
        %1389 = vst.msk [vmem:[%s617] sm:$0xff] %vm810, %v1384
        %s1390 = sand.u32 %s309, 1
        %s1391 = scalar_lea.sflag [#allocation6], %s1390
        %s1392 = sand.u32 %s309, 1
        %s1393 = smul.addr %s1392, 32
        %s1394 = scalar_lea.vmem [#allocation19], %s1393
        %s1395 = sand.u32 %s337, 1
        %s1396 = scalar_lea.sflag [#allocation21], %s1395
        %s1397 = sand.u32 %s337, 1
        %s1398 = smul.addr %s1397, 8
        %s1399 = scalar_lea.vmem [#allocation20], %s1398
        // Predicated region
        $region105: #{tpu_custom_call.1} parent=63 // pred_check
          %p1400 = pneg %p319
        $region106: #{tpu_custom_call.1} parent=63 // pred_check_branch
          %1402 = sbr.rel (%p1400) target = $region108
        $region107: #{tpu_custom_call.1} parent=63 // pred_region
          %s1404 = ssub.s32 512, 512
          %1405 = vsyncadd %s1391, %s1404
          %s1406 = smul.addr %s43, 8
          %s1407 = sadd.s32 %s44, %s1406
          %s1408 = smul.addr %s1407, 128
          %s1409 = scalar_lea.hbm %s11, %s1408
          %s1410 = sshll.u32 %s1394, 4
          %s1411 = int_to_ptr.vmem [resolvable:$true] %s1410
          %1416 = dma.vmem_to_hbm [thread:$0]  %s1411, 512, %s1409, %s1391, 128, 256, 8
        $region108: #{tpu_custom_call.1} parent=63 // pred_fallthru
          _
        // Predicated region
        $region109: #{tpu_custom_call.1} parent=63 // pred_check
          %p1417 = pneg %p347
        $region110: #{tpu_custom_call.1} parent=63 // pred_check_branch
          %1419 = sbr.rel (%p1417) target = $region112
        $region111: #{tpu_custom_call.1} parent=63 // pred_region
          %s1421 = ssub.s32 128, 128
          %1422 = vsyncadd %s1396, %s1421
          %s1423 = smul.addr %s43, 2
          %s1424 = sadd.s32 %s44, %s1423
          %s1425 = smul.addr %s1424, 128
          %s1426 = scalar_lea.hbm %s12, %s1425
          %s1428 = sshll.u32 %s1399, 4
          %s1429 = int_to_ptr.vmem [resolvable:$true] %s1428
          %1431 = dma.vmem_to_hbm [thread:$0]  %s1429, 128, %s1426, %s1396
        $region112: #{tpu_custom_call.1} parent=63 // pred_fallthru
          _
      $region64: #{tpu_custom_call.1} parent=5 // pred_fallthru
        _
      %p1432 = scmp.le.s32.totalorder 2, %s34
      // Predicated region
      $region113: #{tpu_custom_call.1} parent=5 // pred_check
        %p1433 = pneg %p1432
      $region114: #{tpu_custom_call.1} parent=5 // pred_check_branch
        %1435 = sbr.rel (%p1433) target = $region116
      $region115: #{tpu_custom_call.1} parent=5 // pred_region
        %s1436 = ssub.s32 %s34, 2
        // Predicated region
        $region117: #{tpu_custom_call.1} parent=115 // pred_check
          %p1437 = pneg %p325
        $region118: #{tpu_custom_call.1} parent=115 // pred_check_branch
          %1439 = sbr.rel (%p1437) target = $region120
        $region119: #{tpu_custom_call.1} parent=115 // pred_region
          %s1440 = sand.u32 %s310, 1
          %s1441 = scalar_lea.sflag [#allocation6], %s1440
          %s1442 = sand.u32 %s310, 1
          %s1443 = smul.addr %s1442, 32
          %s1444 = scalar_lea.vmem [#allocation19], %s1443
          %1445 = dma.done %s1441, 512
        $region120: #{tpu_custom_call.1} parent=115 // pred_fallthru
          _
        // Predicated region
        $region121: #{tpu_custom_call.1} parent=115 // pred_check
          %p1446 = pneg %p353
        $region122: #{tpu_custom_call.1} parent=115 // pred_check_branch
          %1448 = sbr.rel (%p1446) target = $region124
        $region123: #{tpu_custom_call.1} parent=115 // pred_region
          %s1449 = sand.u32 %s338, 1
          %s1450 = scalar_lea.sflag [#allocation21], %s1449
          %s1451 = sand.u32 %s338, 1
          %s1452 = smul.addr %s1451, 8
          %s1453 = scalar_lea.vmem [#allocation20], %s1452
          %1454 = dma.done %s1450, 128
        $region124: #{tpu_custom_call.1} parent=115 // pred_fallthru
          _
      $region116: #{tpu_custom_call.1} parent=5 // pred_fallthru
        _
    $region6: #{tpu_custom_call.1} parent=1 // loop_footer
      %s38 = sadd.s32 1, %s34
    $region7: #{tpu_custom_call.1} parent=1 // loop_footer_branch
      %33 = sbr.rel target = $region3
    $region8: #{tpu_custom_call.1} parent=1 // loop_exit
      _
    %1455 = vsyncpa [#allocation5], 1
    %s1456 = scalar_lea.sflag [#allocation5], 1
    %1457 = vsyncpa %s1456, 1
    %1458 = vsyncpa [#allocation8], 1
    %s1459 = scalar_lea.sflag [#allocation8], 1
    %1460 = vsyncpa %s1459, 1
    %1461 = vsyncpa [#allocation11], 1
    %1462 = vsyncpa [#allocation14], 1
    %1463 = vsyncpa [#allocation17], 1
    %1464 = vsyncpa [#allocation6], 1
    %s1465 = scalar_lea.sflag [#allocation6], 1
    %1466 = vsyncpa %s1465, 1
    %1467 = vsyncpa [#allocation21], 1
    %s1468 = scalar_lea.sflag [#allocation21], 1
    %1469 = vsyncpa %s1468, 1

</llo_original>
